<compile_context>
chip_gen: v6e
topology: v6e:2x2x1
jax: 0.10.0
libtpu: 0.0.40
codegen_flags: <defaults>
</compile_context>

<pallas_src>
import functools
import numpy as np

import jax
import jax.numpy as jnp
from jax import lax
from jax.experimental import pallas as pl
from jax.experimental.pallas import tpu as pltpu

DIM_X = 20
IN_FEATS = 1 + 2 * DIM_X                    # 41
NUM_HIDDENS = [DIM_X * 2 + 10,              # 50
               DIM_X * 4 + 10,              # 90
               DIM_X * 2 + 10]              # 50
BN_EPS = 1e-6

# Up to this batch size the x contribution is added with statically unrolled
# lane-slice read-modify-writes (no (B, N) temporaries); above it we use the
# bf16 selection-matmul fallback to keep the unrolled IR / compile time small.
_STATIC_EXPAND_MAX_B = 128


# ----------------------------------------------------------------------------
# Fused single-pass BatchNorm over the lane (N) axis, stats on the MXU.
# ----------------------------------------------------------------------------
def _bn_scale_shift(h, w_col, b_col, inv_n, ones_row):
    """h: (F, N) f32; w_col/b_col: (F, 1). Returns per-feature scale & shift."""
    # Per-feature sum / sum-of-squares as (F, N) x (1, N)^T MXU matvecs.  The
    # MXU has huge slack at these tiny contraction sizes; the 2 XLUs (which
    # would otherwise run 2 cross-lane reduces per BN over (F, N)) are freed.
    dn_tb = (((1,), (1,)), ((), ()))                     # contract lane (N) axes
    s = lax.dot_general(h, ones_row, dn_tb,
                        preferred_element_type=jnp.float32)          # (F, 1)
    ss = lax.dot_general(h * h, ones_row, dn_tb,
                         preferred_element_type=jnp.float32)         # (F, 1)
    mean = s * inv_n
    # Single-pass E[h^2] - mean^2; max() guards fp round-off.  A centered
    # two-pass variance would cost one extra full VPU pass over (F, N).
    var = jnp.maximum(ss * inv_n - mean * mean, 0.0)
    scale = w_col * lax.rsqrt(var + BN_EPS)              # rsqrt on (F,1) only
    shift = b_col - mean * scale
    return scale, shift


def _bn_lane(h, w_col, b_col, inv_n, ones_row):
    scale, shift = _bn_scale_shift(h, w_col, b_col, inv_n, ones_row)
    return h * scale + shift


def _bn_relu_lane(h, w_col, b_col, inv_n, ones_row):
    scale, shift = _bn_scale_shift(h, w_col, b_col, inv_n, ones_row)
    # bf16 output feeds the next MXU matmul directly.
    return jnp.maximum(h * scale + shift, 0.0).astype(jnp.bfloat16)


# ----------------------------------------------------------------------------
# Kernel
# ----------------------------------------------------------------------------
def fnnetr_kernel(x_ref, z_ref,
                  bn0wx_ref, bn0bx_ref, bn0wz_ref, bn0bz_ref,
                  w1x_ref, w1z_ref, bn1w_ref, bn1b_ref,
                  w2_ref, bn2w_ref, bn2b_ref,
                  w3_ref, bn3w_ref, bn3b_ref,
                  w4_ref, bn4w_ref, bn4b_ref,
                  out_ref, h1_ref):
    x = x_ref[...]                                    # (B, dX)  f32
    z = z_ref[...]                                    # (N, dX)  f32
    B = x.shape[0]
    N = z.shape[0]
    M = N // B
    inv_n = jnp.float32(1.0 / N)

    # Shared (1, N) ones row for every MXU-based BN reduction (hoisted once;
    # (1, N) layout costs ~32 B/row vs 512 B/row for an (N, 1) column).
    ones_row = jnp.ones((1, N), jnp.float32)

    # ---- bn0 folded into the first linear layer ----------------------------
    # Stats of the M-fold duplicated x over the N rows == stats over B rows.
    mean_x = jnp.mean(x, axis=0, keepdims=True)                         # (1, dX)
    var_x = jnp.maximum(jnp.mean(x * x, axis=0, keepdims=True)
                        - mean_x * mean_x, 0.0)
    scale_x = bn0wx_ref[...] * lax.rsqrt(var_x + BN_EPS)                # (1, dX)
    shift_x = bn0bx_ref[...] - mean_x * scale_x                         # (1, dX)

    mean_z = jnp.mean(z, axis=0, keepdims=True)                         # (1, dX)
    var_z = jnp.maximum(jnp.mean(z * z, axis=0, keepdims=True)
                        - mean_z * mean_z, 0.0)
    scale_z = bn0wz_ref[...] * lax.rsqrt(var_z + BN_EPS)
    shift_z = bn0bz_ref[...] - mean_z * scale_z

    w1x = w1x_ref[...]                                                  # (H1, dX)
    w1z = w1z_ref[...]                                                  # (H1, dX)

    # Constant per-feature bias from bn0's shift; bn1's mean subtraction
    # cancels it exactly — kept on the tiny (H1, 1) path for conditioning.
    bias1 = (jnp.sum(w1x * shift_x, axis=1, keepdims=True)
             + jnp.sum(w1z * shift_z, axis=1, keepdims=True))           # (H1, 1)

    # Contract last dims of both operands: (m, k) . (n, k) -> (m, n)
    dn_tb = (((1,), (1,)), ((), ()))

    # x path: per-batch contribution (H1, B) — tiny f32 matmul.
    cx_b = lax.dot_general(w1x * scale_x, x, dn_tb,
                           preferred_element_type=jnp.float32) + bias1  # (H1, B)

    # z path: the big matmul, lane-dense output. bf16 MXU operands, f32 acc.
    cz = lax.dot_general((w1z * scale_z).astype(jnp.bfloat16),
                         z.astype(jnp.bfloat16), dn_tb,
                         preferred_element_type=jnp.float32)            # (H1, N)

    # Add cx_b[:, b] to the M consecutive columns [b*M, (b+1)*M) of cz.
    if B <= _STATIC_EXPAND_MAX_B:
        # No (B, N) mask, no f32 expansion matmul: statically unrolled
        # column-block read-modify-writes into the (H1, N) VMEM scratch.
        h1_ref[...] = cz
        for b in range(B):                      # static unroll, static slices
            sl = slice(b * M, (b + 1) * M)
            h1_ref[:, sl] = h1_ref[:, sl] + cx_b[:, b:b + 1]
    else:
        # Large-B fallback: bf16 selection matmul (mask is exact in bf16, runs
        # at full MXU rate); keeps the unrolled-IR size bounded.
        col = lax.broadcasted_iota(jnp.int32, (B, N), 1)
        lo = lax.broadcasted_iota(jnp.int32, (B, N), 0) * M
        expand = ((col >= lo) & (col < lo + M)).astype(jnp.bfloat16)    # (B, N)
        h1_ref[...] = cz + jnp.dot(cx_b.astype(jnp.bfloat16), expand,
                                   preferred_element_type=jnp.float32)
    h = h1_ref[...]                                                     # (H1, N)

    h = _bn_relu_lane(h, bn1w_ref[...], bn1b_ref[...], inv_n, ones_row)

    h = jnp.dot(w2_ref[...], h, preferred_element_type=jnp.float32)    # (H2, N)
    h = _bn_relu_lane(h, bn2w_ref[...], bn2b_ref[...], inv_n, ones_row)

    h = jnp.dot(w3_ref[...], h, preferred_element_type=jnp.float32)    # (H3, N)
    h = _bn_relu_lane(h, bn3w_ref[...], bn3b_ref[...], inv_n, ones_row)

    # Final linear; its torch bias is dropped (constant before training-mode
    # BN is removed exactly by bn4's mean subtraction).
    h = jnp.dot(w4_ref[...], h, preferred_element_type=jnp.float32)    # (dX, N)
    out_ref[...] = _bn_lane(h, bn4w_ref[...], bn4b_ref[...], inv_n, ones_row)


# ----------------------------------------------------------------------------
# Wrapper
# ----------------------------------------------------------------------------
@functools.lru_cache(maxsize=None)
def _vmem_limit_bytes():
    """Generation-aware VMEM budget (v7x: 64 MiB/TC; v5e/v6e: 128 MiB)."""
    cap = 64 * 1024 * 1024            # conservative default = v7x per-TC VMEM
    try:
        cap = int(pltpu.get_tpu_info().vmem_capacity_bytes)
    except Exception:
        pass
    # ~40% headroom for compiler temporaries / double-counted copies.
    return min(int(cap * 0.6), 96 * 1024 * 1024)


def _fnnetr_lane_dense(x, z_flat, params):
    """Fused forward; returns the lane-dense (dim_X, N) output."""
    N, dX = z_flat.shape
    H1 = NUM_HIDDENS[0]
    w1 = params["w1"]                       # (50, 41), torch (out, in) layout

    args = [
        x.astype(jnp.float32),                                 # (B, dX)
        z_flat.astype(jnp.float32),                            # (N, dX)
        params["bn0_w"][1:1 + dX].reshape(1, dX),              # bn0 x-section
        params["bn0_b"][1:1 + dX].reshape(1, dX),
        params["bn0_w"][1 + dX:].reshape(1, dX),               # bn0 z-section
        params["bn0_b"][1 + dX:].reshape(1, dX),
        w1[:, 1:1 + dX],                    # W1 x-cols (f32: bn0 fold in-kernel)
        w1[:, 1 + dX:],                     # W1 z-cols
        params["bn1_w"].reshape(-1, 1), params["bn1_b"].reshape(-1, 1),
        params["w2"].astype(jnp.bfloat16),  # cast outside the kernel
        params["bn2_w"].reshape(-1, 1), params["bn2_b"].reshape(-1, 1),
        params["w3"].astype(jnp.bfloat16),
        params["bn3_w"].reshape(-1, 1), params["bn3_b"].reshape(-1, 1),
        params["w4"].astype(jnp.bfloat16),
        params["bn4_w"].reshape(-1, 1), params["bn4_b"].reshape(-1, 1),
    ]

    return pl.pallas_call(
        fnnetr_kernel,
        out_shape=jax.ShapeDtypeStruct((dX, N), jnp.float32),  # lane-dense
        in_specs=[pl.BlockSpec(memory_space=pltpu.MemorySpace.VMEM)] * len(args),
        out_specs=pl.BlockSpec(memory_space=pltpu.MemorySpace.VMEM),
        scratch_shapes=[pltpu.VMEM((H1, N), jnp.float32)],     # layer-1 acc
        compiler_params=pltpu.CompilerParams(
            vmem_limit_bytes=_vmem_limit_bytes()),
    )(*args)


@jax.jit
def fnnetr_forward(t, x, z, params):
    """t: scalar, x: (B, dim_X), z: (B, M, dim_X)  ->  (B, M, dim_X)."""
    del t   # The constant-t column only contributes a per-feature constant
            # before bn1 (training mode); its mean subtraction removes it.
    B, M, dX = z.shape
    out = _fnnetr_lane_dense(x, z.reshape(B * M, dX), params)
    # Spec output is (B, M, dim_X); this transpose is wrapper-side layout
    # plumbing only (a separate XLA op that re-reads/re-writes the output).
    # Consumers that can take the lane-dense (dim_X, N) layout should use
    # _fnnetr_lane_dense directly and skip it.
    return out.T.reshape(B, M, dX)


# ----------------------------------------------------------------------------
# Parameters + pure-JAX f32 reference (exact torch semantics) for sanity check
# ----------------------------------------------------------------------------
def init_params(key):
    """Same init distributions as the torch module; Linear weights in torch
    (out_features, in_features) layout."""
    ks = jax.random.split(key, 16)

    def bn_init(kw, kb, c):
        return (0.3 + 0.2 * jax.random.normal(kw, (c,), jnp.float32),
                0.1 * jax.random.normal(kb, (c,), jnp.float32))

    p = {}
    p["bn0_w"], p["bn0_b"] = bn_init(ks[0], ks[1], IN_FEATS)
    dims_in = [IN_FEATS] + NUM_HIDDENS
    dims_out = NUM_HIDDENS + [DIM_X]
    i = 2
    for li, (din, dout) in enumerate(zip(dims_in, dims_out), start=1):
        bound = 1.0 / float(din) ** 0.5
        p[f"w{li}"] = jax.random.uniform(ks[i], (dout, din), jnp.float32,
                                         minval=-bound, maxval=bound)
        i += 1
        if li == len(dims_in):               # last Linear has a bias
            p["b4"] = jax.random.uniform(ks[i], (dout,), jnp.float32,
                                         minval=-bound, maxval=bound)
            i += 1
        p[f"bn{li}_w"], p[f"bn{li}_b"] = bn_init(ks[i], ks[i + 1], dout)
        i += 2
    return p


def reference_forward(t, x, z, p):
    """Plain-JAX f32 replica of the torch forward (training-mode BN)."""
    B, M, dX = z.shape
    t_ = jnp.full((B, M, 1), t, jnp.float32)
    x_ = jnp.broadcast_to(x[:, None, :], (B, M, dX))
    h = jnp.concatenate([t_, x_, z], axis=2).reshape(B * M, 1 + 2 * dX)

    def bn(a, w, b):
        m = jnp.mean(a, axis=0, keepdims=True)
        v = jnp.mean((a - m) ** 2, axis=0, keepdims=True)
        return (a - m) * lax.rsqrt(v + BN_EPS) * w + b

    h = bn(h, p["bn0_w"], p["bn0_b"])
    h = jnp.maximum(bn(h @ p["w1"].T, p["bn1_w"], p["bn1_b"]), 0.0)
    h = jnp.maximum(bn(h @ p["w2"].T, p["bn2_w"], p["bn2_b"]), 0.0)
    h = jnp.maximum(bn(h @ p["w3"].T, p["bn3_w"], p["bn3_b"]), 0.0)
    h = bn(h @ p["w4"].T + p["b4"], p["bn4_w"], p["bn4_b"])
    return h.reshape(B, M, dX)


if __name__ == "__main__":
    key = jax.random.PRNGKey(0)
    kp, kx, kz, kx2, kz2 = jax.random.split(key, 5)
    params = init_params(kp)
    t = jnp.float32(0.25)

    # Small config (dim_X = 20, MC_sample_size = 10): static-unroll x-path.
    B, M = 4, 10
    x = jax.random.normal(kx, (B, DIM_X), jnp.float32)
    z = jax.random.normal(kz, (B, M, DIM_X), jnp.float32)
    out = fnnetr_forward(t, x, z, params)
    jax.block_until_ready(out)
    assert out.shape == (B, M, DIM_X)
    ref = reference_forward(t, x, z, params)
    np.testing.assert_allclose(np.asarray(out), np.asarray(ref),
                               rtol=0.1, atol=0.1)

    # Larger batch: exercises the bf16 selection-matmul fallback (B > 128).
    B2, M2 = 130, 4
    x2 = jax.random.normal(kx2, (B2, DIM_X), jnp.float32)
    z2 = jax.random.normal(kz2, (B2, M2, DIM_X), jnp.float32)
    out2 = fnnetr_forward(t, x2, z2, params)
    jax.block_until_ready(out2)
    ref2 = reference_forward(t, x2, z2, params)
    np.testing.assert_allclose(np.asarray(out2), np.asarray(ref2),
                               rtol=0.1, atol=0.1)

    print("KERNEL_OK")
</pallas_src>

<mosaic_0001>
module attributes {stable_mosaic.version = 11 : i64} {
  func.func @fnnetr_kernel(%arg0: memref<4x20xf32, #tpu.memory_space<vmem>>, %arg1: memref<40x20xf32, #tpu.memory_space<vmem>>, %arg2: memref<1x20xf32, #tpu.memory_space<vmem>>, %arg3: memref<1x20xf32, #tpu.memory_space<vmem>>, %arg4: memref<1x20xf32, #tpu.memory_space<vmem>>, %arg5: memref<1x20xf32, #tpu.memory_space<vmem>>, %arg6: memref<50x20xf32, #tpu.memory_space<vmem>>, %arg7: memref<50x20xf32, #tpu.memory_space<vmem>>, %arg8: memref<50x1xf32, #tpu.memory_space<vmem>>, %arg9: memref<50x1xf32, #tpu.memory_space<vmem>>, %arg10: memref<90x50xbf16, #tpu.memory_space<vmem>>, %arg11: memref<90x1xf32, #tpu.memory_space<vmem>>, %arg12: memref<90x1xf32, #tpu.memory_space<vmem>>, %arg13: memref<50x90xbf16, #tpu.memory_space<vmem>>, %arg14: memref<50x1xf32, #tpu.memory_space<vmem>>, %arg15: memref<50x1xf32, #tpu.memory_space<vmem>>, %arg16: memref<20x50xbf16, #tpu.memory_space<vmem>>, %arg17: memref<20x1xf32, #tpu.memory_space<vmem>>, %arg18: memref<20x1xf32, #tpu.memory_space<vmem>>, %arg19: memref<20x40xf32, #tpu.memory_space<vmem>>, %arg20: memref<50x40xf32, #tpu.memory_space<vmem>>) attributes {dimension_semantics = [], scalar_prefetch = 0 : i64, scratch_operands = 1 : i64, tpu.core_type = #tpu.core_type<tc>} {
    %c0 = arith.constant 0 : index
    %c0_0 = arith.constant 0 : index
    %0 = vector.load %arg0[%c0, %c0_0] : memref<4x20xf32, #tpu.memory_space<vmem>>, vector<4x20xf32>
    %c0_1 = arith.constant 0 : index
    %c0_2 = arith.constant 0 : index
    %1 = vector.load %arg1[%c0_1, %c0_2] : memref<40x20xf32, #tpu.memory_space<vmem>>, vector<40x20xf32>
    %cst = arith.constant 1.000000e+00 : f32
    %2 = vector.broadcast %cst : f32 to vector<1x40xf32>
    %cst_3 = arith.constant dense<0.000000e+00> : vector<20xf32>
    %3 = vector.multi_reduction <add>, %0, %cst_3 [0] : vector<4x20xf32> to vector<20xf32>
    %4 = vector.shape_cast %3 : vector<20xf32> to vector<1x20xf32>
    %cst_4 = arith.constant 4.000000e+00 : f32
    %5 = vector.broadcast %cst_4 : f32 to vector<1x20xf32>
    %6 = arith.divf %4, %5 : vector<1x20xf32>
    %7 = arith.mulf %0, %0 : vector<4x20xf32>
    %cst_5 = arith.constant dense<0.000000e+00> : vector<20xf32>
    %8 = vector.multi_reduction <add>, %7, %cst_5 [0] : vector<4x20xf32> to vector<20xf32>
    %9 = vector.shape_cast %8 : vector<20xf32> to vector<1x20xf32>
    %cst_6 = arith.constant 4.000000e+00 : f32
    %10 = vector.broadcast %cst_6 : f32 to vector<1x20xf32>
    %11 = arith.divf %9, %10 : vector<1x20xf32>
    %12 = arith.mulf %6, %6 : vector<1x20xf32>
    %13 = arith.subf %11, %12 : vector<1x20xf32>
    %cst_7 = arith.constant 0.000000e+00 : f32
    %14 = vector.broadcast %cst_7 : f32 to vector<1x20xf32>
    %15 = arith.maximumf %13, %14 : vector<1x20xf32>
    %c0_8 = arith.constant 0 : index
    %c0_9 = arith.constant 0 : index
    %16 = vector.load %arg2[%c0_8, %c0_9] : memref<1x20xf32, #tpu.memory_space<vmem>>, vector<1x20xf32>
    %cst_10 = arith.constant 9.99999997E-7 : f32
    %17 = vector.broadcast %cst_10 : f32 to vector<1x20xf32>
    %18 = arith.addf %15, %17 : vector<1x20xf32>
    %19 = math.rsqrt %18 : vector<1x20xf32>
    %20 = arith.mulf %16, %19 : vector<1x20xf32>
    %c0_11 = arith.constant 0 : index
    %c0_12 = arith.constant 0 : index
    %21 = vector.load %arg3[%c0_11, %c0_12] : memref<1x20xf32, #tpu.memory_space<vmem>>, vector<1x20xf32>
    %22 = arith.mulf %6, %20 : vector<1x20xf32>
    %23 = arith.subf %21, %22 : vector<1x20xf32>
    %cst_13 = arith.constant dense<0.000000e+00> : vector<20xf32>
    %24 = vector.multi_reduction <add>, %1, %cst_13 [0] : vector<40x20xf32> to vector<20xf32>
    %25 = vector.shape_cast %24 : vector<20xf32> to vector<1x20xf32>
    %cst_14 = arith.constant 4.000000e+01 : f32
    %26 = vector.broadcast %cst_14 : f32 to vector<1x20xf32>
    %27 = arith.divf %25, %26 : vector<1x20xf32>
    %28 = arith.mulf %1, %1 : vector<40x20xf32>
    %cst_15 = arith.constant dense<0.000000e+00> : vector<20xf32>
    %29 = vector.multi_reduction <add>, %28, %cst_15 [0] : vector<40x20xf32> to vector<20xf32>
    %30 = vector.shape_cast %29 : vector<20xf32> to vector<1x20xf32>
    %cst_16 = arith.constant 4.000000e+01 : f32
    %31 = vector.broadcast %cst_16 : f32 to vector<1x20xf32>
    %32 = arith.divf %30, %31 : vector<1x20xf32>
    %33 = arith.mulf %27, %27 : vector<1x20xf32>
    %34 = arith.subf %32, %33 : vector<1x20xf32>
    %cst_17 = arith.constant 0.000000e+00 : f32
    %35 = vector.broadcast %cst_17 : f32 to vector<1x20xf32>
    %36 = arith.maximumf %34, %35 : vector<1x20xf32>
    %c0_18 = arith.constant 0 : index
    %c0_19 = arith.constant 0 : index
    %37 = vector.load %arg4[%c0_18, %c0_19] : memref<1x20xf32, #tpu.memory_space<vmem>>, vector<1x20xf32>
    %cst_20 = arith.constant 9.99999997E-7 : f32
    %38 = vector.broadcast %cst_20 : f32 to vector<1x20xf32>
    %39 = arith.addf %36, %38 : vector<1x20xf32>
    %40 = math.rsqrt %39 : vector<1x20xf32>
    %41 = arith.mulf %37, %40 : vector<1x20xf32>
    %c0_21 = arith.constant 0 : index
    %c0_22 = arith.constant 0 : index
    %42 = vector.load %arg5[%c0_21, %c0_22] : memref<1x20xf32, #tpu.memory_space<vmem>>, vector<1x20xf32>
    %43 = arith.mulf %27, %41 : vector<1x20xf32>
    %44 = arith.subf %42, %43 : vector<1x20xf32>
    %c0_23 = arith.constant 0 : index
    %c0_24 = arith.constant 0 : index
    %45 = vector.load %arg6[%c0_23, %c0_24] : memref<50x20xf32, #tpu.memory_space<vmem>>, vector<50x20xf32>
    %c0_25 = arith.constant 0 : index
    %c0_26 = arith.constant 0 : index
    %46 = vector.load %arg7[%c0_25, %c0_26] : memref<50x20xf32, #tpu.memory_space<vmem>>, vector<50x20xf32>
    %47 = vector.broadcast %23 : vector<1x20xf32> to vector<50x20xf32>
    %48 = arith.mulf %45, %47 : vector<50x20xf32>
    %cst_27 = arith.constant dense<0.000000e+00> : vector<50xf32>
    %49 = vector.multi_reduction <add>, %48, %cst_27 [1] : vector<50x20xf32> to vector<50xf32>
    %50 = vector.shape_cast %49 : vector<50xf32> to vector<50x1xf32>
    %51 = vector.broadcast %44 : vector<1x20xf32> to vector<50x20xf32>
    %52 = arith.mulf %46, %51 : vector<50x20xf32>
    %cst_28 = arith.constant dense<0.000000e+00> : vector<50xf32>
    %53 = vector.multi_reduction <add>, %52, %cst_28 [1] : vector<50x20xf32> to vector<50xf32>
    %54 = vector.shape_cast %53 : vector<50xf32> to vector<50x1xf32>
    %55 = arith.addf %50, %54 : vector<50x1xf32>
    %56 = vector.broadcast %20 : vector<1x20xf32> to vector<50x20xf32>
    %57 = arith.mulf %45, %56 : vector<50x20xf32>
    %cst_29 = arith.constant dense<0.000000e+00> : vector<50x4xf32>
    %58 = tpu.matmul %57, %0, %cst_29 {dimension_numbers = #tpu.dot_dimension_numbers<[1], [1], [0], [0], [0, 0, 1, 0], [], []>} : vector<50x20xf32>, vector<4x20xf32>, vector<50x4xf32> -> vector<50x4xf32>
    %59 = vector.broadcast %55 : vector<50x1xf32> to vector<50x4xf32>
    %60 = arith.addf %58, %59 : vector<50x4xf32>
    %61 = vector.broadcast %41 : vector<1x20xf32> to vector<50x20xf32>
    %62 = arith.mulf %46, %61 : vector<50x20xf32>
    %63 = arith.truncf %62 : vector<50x20xf32> to vector<50x20xbf16>
    %64 = arith.truncf %1 : vector<40x20xf32> to vector<40x20xbf16>
    %cst_30 = arith.constant dense<0.000000e+00> : vector<50x40xf32>
    %65 = tpu.matmul %63, %64, %cst_30 {dimension_numbers = #tpu.dot_dimension_numbers<[1], [1], [0], [0], [0, 0, 1, 0], [], []>} : vector<50x20xbf16>, vector<40x20xbf16>, vector<50x40xf32> -> vector<50x40xf32>
    %c0_31 = arith.constant 0 : index
    %c0_32 = arith.constant 0 : index
    %66 = vector.load %arg20[%c0_31, %c0_32] : memref<50x40xf32, #tpu.memory_space<vmem>>, vector<50x40xf32>
    tpu.vector_store %arg20[%c0_31, %c0_32], %65 {strides = array<i32>} : memref<50x40xf32, #tpu.memory_space<vmem>>, vector<50x40xf32>,
    %c0_33 = arith.constant 0 : index
    %c0_34 = arith.constant 0 : index
    %67 = vector.load %arg20[%c0_33, %c0_34] : memref<50x40xf32, #tpu.memory_space<vmem>>, vector<50x10xf32>
    %68 = vector.extract_strided_slice %60 {offsets = [0, 0], sizes = [50, 1], strides = [1, 1]} : vector<50x4xf32> to vector<50x1xf32>
    %69 = vector.broadcast %68 : vector<50x1xf32> to vector<50x10xf32>
    %70 = arith.addf %67, %69 : vector<50x10xf32>
    %c0_35 = arith.constant 0 : index
    %c0_36 = arith.constant 0 : index
    %71 = vector.load %arg20[%c0_35, %c0_36] : memref<50x40xf32, #tpu.memory_space<vmem>>, vector<50x10xf32>
    tpu.vector_store %arg20[%c0_35, %c0_36], %70 {strides = array<i32>} : memref<50x40xf32, #tpu.memory_space<vmem>>, vector<50x10xf32>,
    %c0_37 = arith.constant 0 : index
    %c10 = arith.constant 10 : index
    %72 = vector.load %arg20[%c0_37, %c10] : memref<50x40xf32, #tpu.memory_space<vmem>>, vector<50x10xf32>
    %73 = vector.extract_strided_slice %60 {offsets = [0, 1], sizes = [50, 1], strides = [1, 1]} : vector<50x4xf32> to vector<50x1xf32>
    %74 = vector.broadcast %73 : vector<50x1xf32> to vector<50x10xf32>
    %75 = arith.addf %72, %74 : vector<50x10xf32>
    %c0_38 = arith.constant 0 : index
    %c10_39 = arith.constant 10 : index
    %76 = vector.load %arg20[%c0_38, %c10_39] : memref<50x40xf32, #tpu.memory_space<vmem>>, vector<50x10xf32>
    tpu.vector_store %arg20[%c0_38, %c10_39], %75 {strides = array<i32>} : memref<50x40xf32, #tpu.memory_space<vmem>>, vector<50x10xf32>,
    %c0_40 = arith.constant 0 : index
    %c20 = arith.constant 20 : index
    %77 = vector.load %arg20[%c0_40, %c20] : memref<50x40xf32, #tpu.memory_space<vmem>>, vector<50x10xf32>
    %78 = vector.extract_strided_slice %60 {offsets = [0, 2], sizes = [50, 1], strides = [1, 1]} : vector<50x4xf32> to vector<50x1xf32>
    %79 = vector.broadcast %78 : vector<50x1xf32> to vector<50x10xf32>
    %80 = arith.addf %77, %79 : vector<50x10xf32>
    %c0_41 = arith.constant 0 : index
    %c20_42 = arith.constant 20 : index
    %81 = vector.load %arg20[%c0_41, %c20_42] : memref<50x40xf32, #tpu.memory_space<vmem>>, vector<50x10xf32>
    tpu.vector_store %arg20[%c0_41, %c20_42], %80 {strides = array<i32>} : memref<50x40xf32, #tpu.memory_space<vmem>>, vector<50x10xf32>,
    %c0_43 = arith.constant 0 : index
    %c30 = arith.constant 30 : index
    %82 = vector.load %arg20[%c0_43, %c30] : memref<50x40xf32, #tpu.memory_space<vmem>>, vector<50x10xf32>
    %83 = vector.extract_strided_slice %60 {offsets = [0, 3], sizes = [50, 1], strides = [1, 1]} : vector<50x4xf32> to vector<50x1xf32>
    %84 = vector.broadcast %83 : vector<50x1xf32> to vector<50x10xf32>
    %85 = arith.addf %82, %84 : vector<50x10xf32>
    %c0_44 = arith.constant 0 : index
    %c30_45 = arith.constant 30 : index
    %86 = vector.load %arg20[%c0_44, %c30_45] : memref<50x40xf32, #tpu.memory_space<vmem>>, vector<50x10xf32>
    tpu.vector_store %arg20[%c0_44, %c30_45], %85 {strides = array<i32>} : memref<50x40xf32, #tpu.memory_space<vmem>>, vector<50x10xf32>,
    %c0_46 = arith.constant 0 : index
    %c0_47 = arith.constant 0 : index
    %87 = vector.load %arg20[%c0_46, %c0_47] : memref<50x40xf32, #tpu.memory_space<vmem>>, vector<50x40xf32>
    %c0_48 = arith.constant 0 : index
    %c0_49 = arith.constant 0 : index
    %88 = vector.load %arg8[%c0_48, %c0_49] : memref<50x1xf32, #tpu.memory_space<vmem>>, vector<50x1xf32>
    %c0_50 = arith.constant 0 : index
    %c0_51 = arith.constant 0 : index
    %89 = vector.load %arg9[%c0_50, %c0_51] : memref<50x1xf32, #tpu.memory_space<vmem>>, vector<50x1xf32>
    %cst_52 = arith.constant dense<0.000000e+00> : vector<50x1xf32>
    %90 = tpu.matmul %87, %2, %cst_52 {dimension_numbers = #tpu.dot_dimension_numbers<[1], [1], [0], [0], [0, 0, 1, 0], [], []>} : vector<50x40xf32>, vector<1x40xf32>, vector<50x1xf32> -> vector<50x1xf32>
    %91 = arith.mulf %87, %87 : vector<50x40xf32>
    %cst_53 = arith.constant dense<0.000000e+00> : vector<50x1xf32>
    %92 = tpu.matmul %91, %2, %cst_53 {dimension_numbers = #tpu.dot_dimension_numbers<[1], [1], [0], [0], [0, 0, 1, 0], [], []>} : vector<50x40xf32>, vector<1x40xf32>, vector<50x1xf32> -> vector<50x1xf32>
    %cst_54 = arith.constant 2.500000e-02 : f32
    %93 = vector.broadcast %cst_54 : f32 to vector<50x1xf32>
    %94 = arith.mulf %90, %93 : vector<50x1xf32>
    %cst_55 = arith.constant 2.500000e-02 : f32
    %95 = vector.broadcast %cst_55 : f32 to vector<50x1xf32>
    %96 = arith.mulf %92, %95 : vector<50x1xf32>
    %97 = arith.mulf %94, %94 : vector<50x1xf32>
    %98 = arith.subf %96, %97 : vector<50x1xf32>
    %cst_56 = arith.constant 0.000000e+00 : f32
    %99 = vector.broadcast %cst_56 : f32 to vector<50x1xf32>
    %100 = arith.maximumf %98, %99 : vector<50x1xf32>
    %cst_57 = arith.constant 9.99999997E-7 : f32
    %101 = vector.broadcast %cst_57 : f32 to vector<50x1xf32>
    %102 = arith.addf %100, %101 : vector<50x1xf32>
    %103 = math.rsqrt %102 : vector<50x1xf32>
    %104 = arith.mulf %88, %103 : vector<50x1xf32>
    %105 = arith.mulf %94, %104 : vector<50x1xf32>
    %106 = arith.subf %89, %105 : vector<50x1xf32>
    %107 = vector.broadcast %104 : vector<50x1xf32> to vector<50x40xf32>
    %108 = arith.mulf %87, %107 : vector<50x40xf32>
    %109 = vector.broadcast %106 : vector<50x1xf32> to vector<50x40xf32>
    %110 = arith.addf %108, %109 : vector<50x40xf32>
    %cst_58 = arith.constant 0.000000e+00 : f32
    %111 = vector.broadcast %cst_58 : f32 to vector<50x40xf32>
    %112 = arith.maximumf %110, %111 : vector<50x40xf32>
    %113 = arith.truncf %112 : vector<50x40xf32> to vector<50x40xbf16>
    %c0_59 = arith.constant 0 : index
    %c0_60 = arith.constant 0 : index
    %114 = vector.load %arg10[%c0_59, %c0_60] : memref<90x50xbf16, #tpu.memory_space<vmem>>, vector<90x50xbf16>
    %cst_61 = arith.constant dense<0.000000e+00> : vector<90x40xf32>
    %115 = tpu.matmul %114, %113, %cst_61 {dimension_numbers = #tpu.dot_dimension_numbers<[1], [0], [0], [1], [0, 0, 1, 1], [], []>} : vector<90x50xbf16>, vector<50x40xbf16>, vector<90x40xf32> -> vector<90x40xf32>
    %c0_62 = arith.constant 0 : index
    %c0_63 = arith.constant 0 : index
    %116 = vector.load %arg11[%c0_62, %c0_63] : memref<90x1xf32, #tpu.memory_space<vmem>>, vector<90x1xf32>
    %c0_64 = arith.constant 0 : index
    %c0_65 = arith.constant 0 : index
    %117 = vector.load %arg12[%c0_64, %c0_65] : memref<90x1xf32, #tpu.memory_space<vmem>>, vector<90x1xf32>
    %cst_66 = arith.constant dense<0.000000e+00> : vector<90x1xf32>
    %118 = tpu.matmul %115, %2, %cst_66 {dimension_numbers = #tpu.dot_dimension_numbers<[1], [1], [0], [0], [0, 0, 1, 0], [], []>} : vector<90x40xf32>, vector<1x40xf32>, vector<90x1xf32> -> vector<90x1xf32>
    %119 = arith.mulf %115, %115 : vector<90x40xf32>
    %cst_67 = arith.constant dense<0.000000e+00> : vector<90x1xf32>
    %120 = tpu.matmul %119, %2, %cst_67 {dimension_numbers = #tpu.dot_dimension_numbers<[1], [1], [0], [0], [0, 0, 1, 0], [], []>} : vector<90x40xf32>, vector<1x40xf32>, vector<90x1xf32> -> vector<90x1xf32>
    %cst_68 = arith.constant 2.500000e-02 : f32
    %121 = vector.broadcast %cst_68 : f32 to vector<90x1xf32>
    %122 = arith.mulf %118, %121 : vector<90x1xf32>
    %cst_69 = arith.constant 2.500000e-02 : f32
    %123 = vector.broadcast %cst_69 : f32 to vector<90x1xf32>
    %124 = arith.mulf %120, %123 : vector<90x1xf32>
    %125 = arith.mulf %122, %122 : vector<90x1xf32>
    %126 = arith.subf %124, %125 : vector<90x1xf32>
    %cst_70 = arith.constant 0.000000e+00 : f32
    %127 = vector.broadcast %cst_70 : f32 to vector<90x1xf32>
    %128 = arith.maximumf %126, %127 : vector<90x1xf32>
    %cst_71 = arith.constant 9.99999997E-7 : f32
    %129 = vector.broadcast %cst_71 : f32 to vector<90x1xf32>
    %130 = arith.addf %128, %129 : vector<90x1xf32>
    %131 = math.rsqrt %130 : vector<90x1xf32>
    %132 = arith.mulf %116, %131 : vector<90x1xf32>
    %133 = arith.mulf %122, %132 : vector<90x1xf32>
    %134 = arith.subf %117, %133 : vector<90x1xf32>
    %135 = vector.broadcast %132 : vector<90x1xf32> to vector<90x40xf32>
    %136 = arith.mulf %115, %135 : vector<90x40xf32>
    %137 = vector.broadcast %134 : vector<90x1xf32> to vector<90x40xf32>
    %138 = arith.addf %136, %137 : vector<90x40xf32>
    %cst_72 = arith.constant 0.000000e+00 : f32
    %139 = vector.broadcast %cst_72 : f32 to vector<90x40xf32>
    %140 = arith.maximumf %138, %139 : vector<90x40xf32>
    %141 = arith.truncf %140 : vector<90x40xf32> to vector<90x40xbf16>
    %c0_73 = arith.constant 0 : index
    %c0_74 = arith.constant 0 : index
    %142 = vector.load %arg13[%c0_73, %c0_74] : memref<50x90xbf16, #tpu.memory_space<vmem>>, vector<50x90xbf16>
    %cst_75 = arith.constant dense<0.000000e+00> : vector<50x40xf32>
    %143 = tpu.matmul %142, %141, %cst_75 {dimension_numbers = #tpu.dot_dimension_numbers<[1], [0], [0], [1], [0, 0, 1, 1], [], []>} : vector<50x90xbf16>, vector<90x40xbf16>, vector<50x40xf32> -> vector<50x40xf32>
    %c0_76 = arith.constant 0 : index
    %c0_77 = arith.constant 0 : index
    %144 = vector.load %arg14[%c0_76, %c0_77] : memref<50x1xf32, #tpu.memory_space<vmem>>, vector<50x1xf32>
    %c0_78 = arith.constant 0 : index
    %c0_79 = arith.constant 0 : index
    %145 = vector.load %arg15[%c0_78, %c0_79] : memref<50x1xf32, #tpu.memory_space<vmem>>, vector<50x1xf32>
    %cst_80 = arith.constant dense<0.000000e+00> : vector<50x1xf32>
    %146 = tpu.matmul %143, %2, %cst_80 {dimension_numbers = #tpu.dot_dimension_numbers<[1], [1], [0], [0], [0, 0, 1, 0], [], []>} : vector<50x40xf32>, vector<1x40xf32>, vector<50x1xf32> -> vector<50x1xf32>
    %147 = arith.mulf %143, %143 : vector<50x40xf32>
    %cst_81 = arith.constant dense<0.000000e+00> : vector<50x1xf32>
    %148 = tpu.matmul %147, %2, %cst_81 {dimension_numbers = #tpu.dot_dimension_numbers<[1], [1], [0], [0], [0, 0, 1, 0], [], []>} : vector<50x40xf32>, vector<1x40xf32>, vector<50x1xf32> -> vector<50x1xf32>
    %cst_82 = arith.constant 2.500000e-02 : f32
    %149 = vector.broadcast %cst_82 : f32 to vector<50x1xf32>
    %150 = arith.mulf %146, %149 : vector<50x1xf32>
    %cst_83 = arith.constant 2.500000e-02 : f32
    %151 = vector.broadcast %cst_83 : f32 to vector<50x1xf32>
    %152 = arith.mulf %148, %151 : vector<50x1xf32>
    %153 = arith.mulf %150, %150 : vector<50x1xf32>
    %154 = arith.subf %152, %153 : vector<50x1xf32>
    %cst_84 = arith.constant 0.000000e+00 : f32
    %155 = vector.broadcast %cst_84 : f32 to vector<50x1xf32>
    %156 = arith.maximumf %154, %155 : vector<50x1xf32>
    %cst_85 = arith.constant 9.99999997E-7 : f32
    %157 = vector.broadcast %cst_85 : f32 to vector<50x1xf32>
    %158 = arith.addf %156, %157 : vector<50x1xf32>
    %159 = math.rsqrt %158 : vector<50x1xf32>
    %160 = arith.mulf %144, %159 : vector<50x1xf32>
    %161 = arith.mulf %150, %160 : vector<50x1xf32>
    %162 = arith.subf %145, %161 : vector<50x1xf32>
    %163 = vector.broadcast %160 : vector<50x1xf32> to vector<50x40xf32>
    %164 = arith.mulf %143, %163 : vector<50x40xf32>
    %165 = vector.broadcast %162 : vector<50x1xf32> to vector<50x40xf32>
    %166 = arith.addf %164, %165 : vector<50x40xf32>
    %cst_86 = arith.constant 0.000000e+00 : f32
    %167 = vector.broadcast %cst_86 : f32 to vector<50x40xf32>
    %168 = arith.maximumf %166, %167 : vector<50x40xf32>
    %169 = arith.truncf %168 : vector<50x40xf32> to vector<50x40xbf16>
    %c0_87 = arith.constant 0 : index
    %c0_88 = arith.constant 0 : index
    %170 = vector.load %arg16[%c0_87, %c0_88] : memref<20x50xbf16, #tpu.memory_space<vmem>>, vector<20x50xbf16>
    %cst_89 = arith.constant dense<0.000000e+00> : vector<20x40xf32>
    %171 = tpu.matmul %170, %169, %cst_89 {dimension_numbers = #tpu.dot_dimension_numbers<[1], [0], [0], [1], [0, 0, 1, 1], [], []>} : vector<20x50xbf16>, vector<50x40xbf16>, vector<20x40xf32> -> vector<20x40xf32>
    %c0_90 = arith.constant 0 : index
    %c0_91 = arith.constant 0 : index
    %172 = vector.load %arg17[%c0_90, %c0_91] : memref<20x1xf32, #tpu.memory_space<vmem>>, vector<20x1xf32>
    %c0_92 = arith.constant 0 : index
    %c0_93 = arith.constant 0 : index
    %173 = vector.load %arg18[%c0_92, %c0_93] : memref<20x1xf32, #tpu.memory_space<vmem>>, vector<20x1xf32>
    %cst_94 = arith.constant dense<0.000000e+00> : vector<20x1xf32>
    %174 = tpu.matmul %171, %2, %cst_94 {dimension_numbers = #tpu.dot_dimension_numbers<[1], [1], [0], [0], [0, 0, 1, 0], [], []>} : vector<20x40xf32>, vector<1x40xf32>, vector<20x1xf32> -> vector<20x1xf32>
    %175 = arith.mulf %171, %171 : vector<20x40xf32>
    %cst_95 = arith.constant dense<0.000000e+00> : vector<20x1xf32>
    %176 = tpu.matmul %175, %2, %cst_95 {dimension_numbers = #tpu.dot_dimension_numbers<[1], [1], [0], [0], [0, 0, 1, 0], [], []>} : vector<20x40xf32>, vector<1x40xf32>, vector<20x1xf32> -> vector<20x1xf32>
    %cst_96 = arith.constant 2.500000e-02 : f32
    %177 = vector.broadcast %cst_96 : f32 to vector<20x1xf32>
    %178 = arith.mulf %174, %177 : vector<20x1xf32>
    %cst_97 = arith.constant 2.500000e-02 : f32
    %179 = vector.broadcast %cst_97 : f32 to vector<20x1xf32>
    %180 = arith.mulf %176, %179 : vector<20x1xf32>
    %181 = arith.mulf %178, %178 : vector<20x1xf32>
    %182 = arith.subf %180, %181 : vector<20x1xf32>
    %cst_98 = arith.constant 0.000000e+00 : f32
    %183 = vector.broadcast %cst_98 : f32 to vector<20x1xf32>
    %184 = arith.maximumf %182, %183 : vector<20x1xf32>
    %cst_99 = arith.constant 9.99999997E-7 : f32
    %185 = vector.broadcast %cst_99 : f32 to vector<20x1xf32>
    %186 = arith.addf %184, %185 : vector<20x1xf32>
    %187 = math.rsqrt %186 : vector<20x1xf32>
    %188 = arith.mulf %172, %187 : vector<20x1xf32>
    %189 = arith.mulf %178, %188 : vector<20x1xf32>
    %190 = arith.subf %173, %189 : vector<20x1xf32>
    %191 = vector.broadcast %188 : vector<20x1xf32> to vector<20x40xf32>
    %192 = arith.mulf %171, %191 : vector<20x40xf32>
    %193 = vector.broadcast %190 : vector<20x1xf32> to vector<20x40xf32>
    %194 = arith.addf %192, %193 : vector<20x40xf32>
    %c0_100 = arith.constant 0 : index
    %c0_101 = arith.constant 0 : index
    %195 = vector.load %arg19[%c0_100, %c0_101] : memref<20x40xf32, #tpu.memory_space<vmem>>, vector<20x40xf32>
    tpu.vector_store %arg19[%c0_100, %c0_101], %194 {strides = array<i32>} : memref<20x40xf32, #tpu.memory_space<vmem>>, vector<20x40xf32>,
    return
  }
}

</mosaic_0001>

<llo_original>
// kernel: fnnetr_forward.1
$region0: #{fnnetr_forward.1}
  #allocation0 [shape = 'u32[]', space=smem, size = 0x4, offset = 0x4, fixed_abs, tag = 'smem constant byte address 0x4 - core index']
  #allocation1 [shape = 'u32[144,128]{1,0:T(1,128)}', space=vmem, size = 0x12000, scoped, tag = 'internal scratch']
  #allocation2 [shape = 'f32[50,40]{1,0:T(8,128)}', space=vmem, size = 0x7000, scoped, tag = 'scratch operand']
  %s0 = inlined_call_operand.vmem [shape: f32[4,20], index: 0, kind: input, shape index: {}]
  %s1 = inlined_call_operand.vmem [shape: f32[40,20], index: 1, kind: input, shape index: {}]
  %s2 = inlined_call_operand.vmem [shape: f32[1,20], index: 2, kind: input, shape index: {}]
  %s3 = inlined_call_operand.vmem [shape: f32[1,20], index: 3, kind: input, shape index: {}]
  %s4 = inlined_call_operand.vmem [shape: f32[1,20], index: 4, kind: input, shape index: {}]
  %s5 = inlined_call_operand.vmem [shape: f32[1,20], index: 5, kind: input, shape index: {}]
  %s6 = inlined_call_operand.vmem [shape: f32[50,20], index: 6, kind: input, shape index: {}]
  %s7 = inlined_call_operand.vmem [shape: f32[50,20], index: 7, kind: input, shape index: {}]
  %s8 = inlined_call_operand.vmem [shape: f32[50,1], index: 8, kind: input, shape index: {}]
  %s9 = inlined_call_operand.vmem [shape: f32[50,1], index: 9, kind: input, shape index: {}]
  %s10 = inlined_call_operand.vmem [shape: bf16[90,50], index: 10, kind: input, shape index: {}]
  %s11 = inlined_call_operand.vmem [shape: f32[90,1], index: 11, kind: input, shape index: {}]
  %s12 = inlined_call_operand.vmem [shape: f32[90,1], index: 12, kind: input, shape index: {}]
  %s13 = inlined_call_operand.vmem [shape: bf16[50,90], index: 13, kind: input, shape index: {}]
  %s14 = inlined_call_operand.vmem [shape: f32[50,1], index: 14, kind: input, shape index: {}]
  %s15 = inlined_call_operand.vmem [shape: f32[50,1], index: 15, kind: input, shape index: {}]
  %s16 = inlined_call_operand.vmem [shape: bf16[20,50], index: 16, kind: input, shape index: {}]
  %s17 = inlined_call_operand.vmem [shape: f32[20,1], index: 17, kind: input, shape index: {}]
  %s18 = inlined_call_operand.vmem [shape: f32[20,1], index: 18, kind: input, shape index: {}]
  %s19 = inlined_call_operand.vmem [shape: f32[20,40], index: 19, kind: output, shape index: {}]
  %s20 = sld [smem:[#allocation0]]
  $region86: #{fnnetr_forward.1} parent=0
    _
  %s22 = ssub.s32 1, %s20
  %s23 = scalar_select 0, %s22, %s20
  // Predicated region
  $region2: #{fnnetr_forward.1} parent=0 // pred_check
    _
  $region3: #{fnnetr_forward.1} parent=0 // pred_check_branch
    %25 = sbr.rel (0) target = $region5
  $region4: #{fnnetr_forward.1} parent=0 // pred_region
    _
  $region5: #{fnnetr_forward.1} parent=0 // pred_fallthru
    _
  // Predicated region
  $region6: #{fnnetr_forward.1} parent=0 // pred_check
    _
  $region7: #{fnnetr_forward.1} parent=0 // pred_check_branch
    %27 = sbr.rel (0) target = $region9
  $region8: #{fnnetr_forward.1} parent=0 // pred_region
    _
  $region9: #{fnnetr_forward.1} parent=0 // pred_fallthru
    _
  // Predicated region
  $region10: #{fnnetr_forward.1} parent=0 // pred_check
    _
  $region11: #{fnnetr_forward.1} parent=0 // pred_check_branch
    %29 = sbr.rel (0) target = $region13
  $region12: #{fnnetr_forward.1} parent=0 // pred_region
    _
  $region13: #{fnnetr_forward.1} parent=0 // pred_fallthru
    _
  // Predicated region
  $region14: #{fnnetr_forward.1} parent=0 // pred_check
    _
  $region15: #{fnnetr_forward.1} parent=0 // pred_check_branch
    %31 = sbr.rel (0) target = $region17
  $region16: #{fnnetr_forward.1} parent=0 // pred_region
    _
  $region17: #{fnnetr_forward.1} parent=0 // pred_fallthru
    _
  // Predicated region
  $region18: #{fnnetr_forward.1} parent=0 // pred_check
    _
  $region19: #{fnnetr_forward.1} parent=0 // pred_check_branch
    %33 = sbr.rel (0) target = $region21
  $region20: #{fnnetr_forward.1} parent=0 // pred_region
    _
  $region21: #{fnnetr_forward.1} parent=0 // pred_fallthru
    _
  // Predicated region
  $region22: #{fnnetr_forward.1} parent=0 // pred_check
    _
  $region23: #{fnnetr_forward.1} parent=0 // pred_check_branch
    %35 = sbr.rel (0) target = $region25
  $region24: #{fnnetr_forward.1} parent=0 // pred_region
    _
  $region25: #{fnnetr_forward.1} parent=0 // pred_fallthru
    _
  // Predicated region
  $region26: #{fnnetr_forward.1} parent=0 // pred_check
    _
  $region27: #{fnnetr_forward.1} parent=0 // pred_check_branch
    %37 = sbr.rel (0) target = $region29
  $region28: #{fnnetr_forward.1} parent=0 // pred_region
    _
  $region29: #{fnnetr_forward.1} parent=0 // pred_fallthru
    _
  // Predicated region
  $region30: #{fnnetr_forward.1} parent=0 // pred_check
    _
  $region31: #{fnnetr_forward.1} parent=0 // pred_check_branch
    %39 = sbr.rel (0) target = $region33
  $region32: #{fnnetr_forward.1} parent=0 // pred_region
    _
  $region33: #{fnnetr_forward.1} parent=0 // pred_fallthru
    _
  // Predicated region
  $region34: #{fnnetr_forward.1} parent=0 // pred_check
    _
  $region35: #{fnnetr_forward.1} parent=0 // pred_check_branch
    %41 = sbr.rel (0) target = $region37
  $region36: #{fnnetr_forward.1} parent=0 // pred_region
    _
  $region37: #{fnnetr_forward.1} parent=0 // pred_fallthru
    _
  // Predicated region
  $region38: #{fnnetr_forward.1} parent=0 // pred_check
    _
  $region39: #{fnnetr_forward.1} parent=0 // pred_check_branch
    %43 = sbr.rel (0) target = $region41
  $region40: #{fnnetr_forward.1} parent=0 // pred_region
    _
  $region41: #{fnnetr_forward.1} parent=0 // pred_fallthru
    _
  // Predicated region
  $region42: #{fnnetr_forward.1} parent=0 // pred_check
    _
  $region43: #{fnnetr_forward.1} parent=0 // pred_check_branch
    %45 = sbr.rel (0) target = $region45
  $region44: #{fnnetr_forward.1} parent=0 // pred_region
    _
  $region45: #{fnnetr_forward.1} parent=0 // pred_fallthru
    _
  // Predicated region
  $region46: #{fnnetr_forward.1} parent=0 // pred_check
    _
  $region47: #{fnnetr_forward.1} parent=0 // pred_check_branch
    %47 = sbr.rel (0) target = $region49
  $region48: #{fnnetr_forward.1} parent=0 // pred_region
    _
  $region49: #{fnnetr_forward.1} parent=0 // pred_fallthru
    _
  // Predicated region
  $region50: #{fnnetr_forward.1} parent=0 // pred_check
    _
  $region51: #{fnnetr_forward.1} parent=0 // pred_check_branch
    %49 = sbr.rel (0) target = $region53
  $region52: #{fnnetr_forward.1} parent=0 // pred_region
    _
  $region53: #{fnnetr_forward.1} parent=0 // pred_fallthru
    _
  // Predicated region
  $region54: #{fnnetr_forward.1} parent=0 // pred_check
    _
  $region55: #{fnnetr_forward.1} parent=0 // pred_check_branch
    %51 = sbr.rel (0) target = $region57
  $region56: #{fnnetr_forward.1} parent=0 // pred_region
    _
  $region57: #{fnnetr_forward.1} parent=0 // pred_fallthru
    _
  // Predicated region
  $region58: #{fnnetr_forward.1} parent=0 // pred_check
    _
  $region59: #{fnnetr_forward.1} parent=0 // pred_check_branch
    %53 = sbr.rel (0) target = $region61
  $region60: #{fnnetr_forward.1} parent=0 // pred_region
    _
  $region61: #{fnnetr_forward.1} parent=0 // pred_fallthru
    _
  // Predicated region
  $region62: #{fnnetr_forward.1} parent=0 // pred_check
    _
  $region63: #{fnnetr_forward.1} parent=0 // pred_check_branch
    %55 = sbr.rel (0) target = $region65
  $region64: #{fnnetr_forward.1} parent=0 // pred_region
    _
  $region65: #{fnnetr_forward.1} parent=0 // pred_fallthru
    _
  // Predicated region
  $region66: #{fnnetr_forward.1} parent=0 // pred_check
    _
  $region67: #{fnnetr_forward.1} parent=0 // pred_check_branch
    %57 = sbr.rel (0) target = $region69
  $region68: #{fnnetr_forward.1} parent=0 // pred_region
    _
  $region69: #{fnnetr_forward.1} parent=0 // pred_fallthru
    _
  // Predicated region
  $region70: #{fnnetr_forward.1} parent=0 // pred_check
    _
  $region71: #{fnnetr_forward.1} parent=0 // pred_check_branch
    %59 = sbr.rel (0) target = $region73
  $region72: #{fnnetr_forward.1} parent=0 // pred_region
    _
  $region73: #{fnnetr_forward.1} parent=0 // pred_fallthru
    _
  // Predicated region
  $region74: #{fnnetr_forward.1} parent=0 // pred_check
    _
  $region75: #{fnnetr_forward.1} parent=0 // pred_check_branch
    %61 = sbr.rel (0) target = $region77
  $region76: #{fnnetr_forward.1} parent=0 // pred_region
    _
  $region77: #{fnnetr_forward.1} parent=0 // pred_fallthru
    _
  %v63 = vld [vmem:[%s0] sm:$0xf]
  %v64 = vld [vmem:[%s1] sm:$0xff]
  %v65 = vld [vmem:[%s1 + $0x8] sm:$0xff]
  %v66 = vld [vmem:[%s1 + $0x10] sm:$0xff]
  %v67 = vld [vmem:[%s1 + $0x18] sm:$0xff]
  %v68 = vld [vmem:[%s1 + $0x20] sm:$0xff]
  %vm69 = vcmask 158720
  %v70 = vsel %vm69, %v63, 0.0
  %v71 = vrot.slane %v70, 4
  %v72 = vadd.f32 %v70, %v71
  %v73 = vrot.slane %v72, 2
  %v74 = vadd.f32 %v72, %v73
  %v75 = vrot.slane %v74, 1
  %v76 = vadd.f32 %v74, %v75
  %v77 = vrcp.pop 4.0
  %v78 = vmul.f32 %v76, %v77
  %v79 = vmul.f32 %v63, %v63
  %v80 = vsel %vm69, %v79, 0.0
  %v81 = vrot.slane %v80, 4
  %v82 = vadd.f32 %v80, %v81
  %v83 = vrot.slane %v82, 2
  %v84 = vadd.f32 %v82, %v83
  %v85 = vrot.slane %v84, 1
  %v86 = vadd.f32 %v84, %v85
  %v87 = vmul.f32 %v86, %v77
  %v88 = vmul.f32 %v78, %v78
  %v89 = vsub.f32 %v87, %v88
  %v90 = vmax.f32 %v89, 0.0
  %v91 = vld [vmem:[%s2] sm:$0x1]
  %v92 = vadd.f32 %v90, 1e-06
  %v93 = vrsqrt.pop %v92
  %v94 = vmul.f32 %v91, %v93
  %v95 = vld [vmem:[%s3] sm:$0x1]
  %v96 = vmul.f32 %v78, %v94
  %v97 = vsub.f32 %v95, %v96
  %vm98 = vcmask 162816
  %v99 = vsel %vm98, %v64, 0.0
  %v100 = vsel %vm98, %v65, 0.0
  %v101 = vadd.f32 %v99, %v100
  %v102 = vsel %vm98, %v66, 0.0
  %v103 = vadd.f32 %v101, %v102
  %v104 = vsel %vm98, %v67, 0.0
  %v105 = vadd.f32 %v103, %v104
  %v106 = vsel %vm98, %v68, 0.0
  %v107 = vadd.f32 %v105, %v106
  %v108 = vrot.slane %v107, 4
  %v109 = vadd.f32 %v107, %v108
  %v110 = vrot.slane %v109, 2
  %v111 = vadd.f32 %v109, %v110
  %v112 = vrot.slane %v111, 1
  %v113 = vadd.f32 %v111, %v112
  %v114 = vrcp.pop 40.0
  %v115 = vmul.f32 %v113, %v114
  %v116 = vmul.f32 %v64, %v64
  %v117 = vmul.f32 %v65, %v65
  %v118 = vmul.f32 %v66, %v66
  %v119 = vmul.f32 %v67, %v67
  %v120 = vmul.f32 %v68, %v68
  %v121 = vsel %vm98, %v116, 0.0
  %v122 = vsel %vm98, %v117, 0.0
  %v123 = vadd.f32 %v121, %v122
  %v124 = vsel %vm98, %v118, 0.0
  %v125 = vadd.f32 %v123, %v124
  %v126 = vsel %vm98, %v119, 0.0
  %v127 = vadd.f32 %v125, %v126
  %v128 = vsel %vm98, %v120, 0.0
  %v129 = vadd.f32 %v127, %v128
  %v130 = vrot.slane %v129, 4
  %v131 = vadd.f32 %v129, %v130
  %v132 = vrot.slane %v131, 2
  %v133 = vadd.f32 %v131, %v132
  %v134 = vrot.slane %v133, 1
  %v135 = vadd.f32 %v133, %v134
  %v136 = vmul.f32 %v135, %v114
  %v137 = vmul.f32 %v115, %v115
  %v138 = vsub.f32 %v136, %v137
  %v139 = vmax.f32 %v138, 0.0
  %v140 = vld [vmem:[%s4] sm:$0x1]
  %v141 = vadd.f32 %v139, 1e-06
  %v142 = vrsqrt.pop %v141
  %v143 = vmul.f32 %v140, %v142
  %v144 = vld [vmem:[%s5] sm:$0x1]
  %v145 = vmul.f32 %v115, %v143
  %v146 = vsub.f32 %v144, %v145
  %v147 = vld [vmem:[%s6] sm:$0xff]
  %v148 = vld [vmem:[%s6 + $0x8] sm:$0xff]
  %v149 = vld [vmem:[%s6 + $0x10] sm:$0xff]
  %v150 = vld [vmem:[%s6 + $0x18] sm:$0xff]
  %v151 = vld [vmem:[%s6 + $0x20] sm:$0xff]
  %v152 = vld [vmem:[%s6 + $0x28] sm:$0xff]
  %v153 = vld [vmem:[%s6 + $0x30] sm:$0x3]
  %v154 = vld [vmem:[%s7] sm:$0xff]
  %v155 = vld [vmem:[%s7 + $0x8] sm:$0xff]
  %v156 = vld [vmem:[%s7 + $0x10] sm:$0xff]
  %v157 = vld [vmem:[%s7 + $0x18] sm:$0xff]
  %v158 = vld [vmem:[%s7 + $0x20] sm:$0xff]
  %v159 = vld [vmem:[%s7 + $0x28] sm:$0xff]
  %v160 = vld [vmem:[%s7 + $0x30] sm:$0x3]
  %v162 = vlaneseq
  %v163 = vshrl.u32 %v162, 7
  %v164 = vsub.s32 0, %v163
  %v165 = vrot.slane %v97, %v164
  %v167 = vmul.f32 %v147, %v165
  %v168 = vmul.f32 %v148, %v165
  %v169 = vmul.f32 %v149, %v165
  %v170 = vmul.f32 %v150, %v165
  %v171 = vmul.f32 %v151, %v165
  %v172 = vmul.f32 %v152, %v165
  %v173 = vmul.f32 %v153, %v165
  %v174 = vsel %vm98, %v167, 0.0
  %175 = vadd.xlane.f32.xlu0 %v174
  %v176 = vpop.xlane.xlu0 %175
  %v177 = vsel %vm98, %v168, 0.0
  %178 = vadd.xlane.f32.xlu0 %v177
  %v179 = vpop.xlane.xlu0 %178
  %v180 = vsel %vm98, %v169, 0.0
  %181 = vadd.xlane.f32.xlu0 %v180
  %v182 = vpop.xlane.xlu0 %181
  %v183 = vsel %vm98, %v170, 0.0
  %184 = vadd.xlane.f32.xlu0 %v183
  %v185 = vpop.xlane.xlu0 %184
  %v186 = vsel %vm98, %v171, 0.0
  %187 = vadd.xlane.f32.xlu0 %v186
  %v188 = vpop.xlane.xlu0 %187
  %v189 = vsel %vm98, %v172, 0.0
  %190 = vadd.xlane.f32.xlu0 %v189
  %v191 = vpop.xlane.xlu0 %190
  %vm192 = vcmask 156672
  %v193 = vsel %vm192, %v173, 0.0
  %194 = vadd.xlane.f32.xlu0 %v193
  %v195 = vpop.xlane.xlu0 %194
  %v197 = vlaneseq
  %v198 = vshrl.u32 %v197, 7
  %v199 = vsub.s32 0, %v198
  %v200 = vrot.slane %v146, %v199
  %v202 = vmul.f32 %v154, %v200
  %v203 = vmul.f32 %v155, %v200
  %v204 = vmul.f32 %v156, %v200
  %v205 = vmul.f32 %v157, %v200
  %v206 = vmul.f32 %v158, %v200
  %v207 = vmul.f32 %v159, %v200
  %v208 = vmul.f32 %v160, %v200
  %v209 = vsel %vm98, %v202, 0.0
  %210 = vadd.xlane.f32.xlu0 %v209
  %v211 = vpop.xlane.xlu0 %210
  %v212 = vsel %vm98, %v203, 0.0
  %213 = vadd.xlane.f32.xlu0 %v212
  %v214 = vpop.xlane.xlu0 %213
  %v215 = vsel %vm98, %v204, 0.0
  %216 = vadd.xlane.f32.xlu0 %v215
  %v217 = vpop.xlane.xlu0 %216
  %v218 = vsel %vm98, %v205, 0.0
  %219 = vadd.xlane.f32.xlu0 %v218
  %v220 = vpop.xlane.xlu0 %219
  %v221 = vsel %vm98, %v206, 0.0
  %222 = vadd.xlane.f32.xlu0 %v221
  %v223 = vpop.xlane.xlu0 %222
  %v224 = vsel %vm98, %v207, 0.0
  %225 = vadd.xlane.f32.xlu0 %v224
  %v226 = vpop.xlane.xlu0 %225
  %v227 = vsel %vm192, %v208, 0.0
  %228 = vadd.xlane.f32.xlu0 %v227
  %v229 = vpop.xlane.xlu0 %228
  %v230 = vadd.f32 %v176, %v211
  %v231 = vadd.f32 %v179, %v214
  %v232 = vadd.f32 %v182, %v217
  %v233 = vadd.f32 %v185, %v220
  %v234 = vadd.f32 %v188, %v223
  %v235 = vadd.f32 %v191, %v226
  %v236 = vadd.f32 %v195, %v229
  %v238 = vlaneseq
  %v239 = vshrl.u32 %v238, 7
  %v240 = vsub.s32 0, %v239
  %v241 = vrot.slane %v94, %v240
  %v243 = vmul.f32 %v147, %v241
  %v244 = vmul.f32 %v148, %v241
  %v245 = vmul.f32 %v149, %v241
  %v246 = vmul.f32 %v150, %v241
  %v247 = vmul.f32 %v151, %v241
  %v248 = vmul.f32 %v152, %v241
  %v249 = vmul.f32 %v153, %v241
  %v251 = vsel %vm98, %v243, 0
  %v254 = vsel %vm98, %v244, 0
  %v257 = vsel %vm98, %v245, 0
  %v260 = vsel %vm98, %v246, 0
  %v263 = vsel %vm98, %v247, 0
  %v266 = vsel %vm98, %v248, 0
  %v269 = vsel %vm98, %v249, 0
  %v272 = vsel %vm98, %v63, 0
  %274 = vmatprep.subr.mxu0 0.0
  %275 = vmatpush1.xpose.msra.mxu0 0.0
  %276 = vmatprep.subr.mxu0 0.0
  %277 = vmatpush1.xpose.msra.mxu0 0.0
  %278 = vmatprep.subr.mxu0 0.0
  %279 = vmatpush1.xpose.msra.mxu0 0.0
  %280 = vmatprep.subr.mxu0 0.0
  %281 = vmatpush1.xpose.msra.mxu0 0.0
  %282 = vmatprep.subr.mxu0 0.0
  %283 = vmatpush1.xpose.msra.mxu0 0.0
  %284 = vmatprep.subr.mxu0 0.0
  %285 = vmatpush1.xpose.msra.mxu0 0.0
  %286 = vmatprep.subr.mxu0 0.0
  %287 = vmatpush1.xpose.msra.mxu0 0.0
  %288 = vmatprep.subr.mxu0 0.0
  %289 = vmatpush1.xpose.msra.mxu0 0.0
  %290 = vmatprep.subr.mxu0 0.0
  %291 = vmatpush1.xpose.msra.mxu0 0.0
  %292 = vmatprep.subr.mxu0 0.0
  %293 = vmatpush1.xpose.msra.mxu0 0.0
  %294 = vmatprep.subr.mxu0 0.0
  %295 = vmatpush1.xpose.msra.mxu0 0.0
  %296 = vmatprep.subr.mxu0 0.0
  %297 = vmatpush1.xpose.msra.mxu0 0.0
  %298 = vmatprep.subr.mxu0 0.0
  %299 = vmatpush1.xpose.msra.mxu0 0.0
  %300 = vmatprep.subr.mxu0 0.0
  %301 = vmatpush1.xpose.msra.mxu0 0.0
  %302 = vmatprep.subr.mxu0 0.0
  %303 = vmatpush1.xpose.msra.mxu0 0.0
  %304 = vmatprep.subr.mxu0 0.0
  %305 = vmatpush1.xpose.msra.mxu0 %v272
  %306 = vmatprep.subr.mxu0 0.0
  %307 = vmatpush2.xpose.msra.mxu0 0.0
  %308 = vmatprep.subr.mxu0 0.0
  %309 = vmatpush2.xpose.msra.mxu0 0.0
  %310 = vmatprep.subr.mxu0 0.0
  %311 = vmatpush2.xpose.msra.mxu0 0.0
  %312 = vmatprep.subr.mxu0 0.0
  %313 = vmatpush2.xpose.msra.mxu0 0.0
  %314 = vmatprep.subr.mxu0 0.0
  %315 = vmatpush2.xpose.msra.mxu0 0.0
  %316 = vmatprep.subr.mxu0 0.0
  %317 = vmatpush2.xpose.msra.mxu0 0.0
  %318 = vmatprep.subr.mxu0 0.0
  %319 = vmatpush2.xpose.msra.mxu0 0.0
  %320 = vmatprep.subr.mxu0 0.0
  %321 = vmatpush2.xpose.msra.mxu0 0.0
  %322 = vmatprep.subr.mxu0 0.0
  %323 = vmatpush2.xpose.msra.mxu0 0.0
  %324 = vmatprep.subr.mxu0 0.0
  %325 = vmatpush2.xpose.msra.mxu0 0.0
  %326 = vmatprep.subr.mxu0 0.0
  %327 = vmatpush2.xpose.msra.mxu0 0.0
  %328 = vmatprep.subr.mxu0 0.0
  %329 = vmatpush2.xpose.msra.mxu0 0.0
  %330 = vmatprep.subr.mxu0 0.0
  %331 = vmatpush2.xpose.msra.mxu0 0.0
  %332 = vmatprep.subr.mxu0 0.0
  %333 = vmatpush2.xpose.msra.mxu0 0.0
  %334 = vmatprep.subr.mxu0 0.0
  %335 = vmatpush2.xpose.msra.mxu0 0.0
  %336 = vmatprep.subr.mxu0 0.0
  %337 = vmatpush2.xpose.msra.mxu0 0.0
  %338 = vmatprep.mubr.f32.mxu0 0.0
  %339 = vmatmul.mubr.f32.gmra.mxu0 %v251
  %v340 = vpop.f32.mrf.mxu0
  %v341 = vadd.f32 %v230, %v340
  %v342 = vpop.f32.mrf.mxu0
  %343 = vmatprep.mubr.f32.mxu0 0.0
  %344 = vmatmul.mubr.f32.gmra.mxu0 %v254
  %v345 = vpop.f32.mrf.mxu0
  %v346 = vadd.f32 %v231, %v345
  %v347 = vpop.f32.mrf.mxu0
  %348 = vmatprep.mubr.f32.mxu0 0.0
  %349 = vmatmul.mubr.f32.gmra.mxu0 %v257
  %v350 = vpop.f32.mrf.mxu0
  %v351 = vadd.f32 %v232, %v350
  %v352 = vpop.f32.mrf.mxu0
  %353 = vmatprep.mubr.f32.mxu0 0.0
  %354 = vmatmul.mubr.f32.gmra.mxu0 %v260
  %v355 = vpop.f32.mrf.mxu0
  %v356 = vadd.f32 %v233, %v355
  %v357 = vpop.f32.mrf.mxu0
  %358 = vmatprep.mubr.f32.mxu0 0.0
  %359 = vmatmul.mubr.f32.gmra.mxu0 %v263
  %v360 = vpop.f32.mrf.mxu0
  %v361 = vadd.f32 %v234, %v360
  %v362 = vpop.f32.mrf.mxu0
  %363 = vmatprep.mubr.f32.mxu0 0.0
  %364 = vmatmul.mubr.f32.gmra.mxu0 %v266
  %v365 = vpop.f32.mrf.mxu0
  %v366 = vadd.f32 %v235, %v365
  %v367 = vpop.f32.mrf.mxu0
  %368 = vmatprep.mubr.f32.mxu0 0.0
  %369 = vmatmul.mubr.f32.gmra.mxu0 %v269
  %v370 = vpop.f32.mrf.mxu0
  %v371 = vadd.f32 %v236, %v370
  %v372 = vpop.f32.mrf.mxu0
  %373 = vdwg.mxu0
  %v375 = vlaneseq
  %v376 = vshrl.u32 %v375, 7
  %v377 = vsub.s32 0, %v376
  %v378 = vrot.slane %v143, %v377
  %v380 = vmul.f32 %v154, %v378
  %v381 = vmul.f32 %v155, %v378
  %v382 = vmul.f32 %v156, %v378
  %v383 = vmul.f32 %v157, %v378
  %v384 = vmul.f32 %v158, %v378
  %v385 = vmul.f32 %v159, %v378
  %v386 = vmul.f32 %v160, %v378
  %v387 = vpack.c.bf16 %v381, %v380
  %v388 = vpack.c.bf16 %v383, %v382
  %v389 = vpack.c.bf16 %v385, %v384
  %v390 = vpack.c.bf16 %v386, %v386
  %v391 = vpack.c.bf16 %v65, %v64
  %v392 = vpack.c.bf16 %v67, %v66
  %v393 = vpack.c.bf16 %v68, %v68
  %v395 = vsel %vm98, %v387, 0
  %v398 = vsel %vm98, %v388, 0
  %v401 = vsel %vm98, %v389, 0
  %v404 = vsel %vm98, %v390, 0
  %v407 = vsel %vm98, %v391, 0
  %v410 = vsel %vm98, %v392, 0
  %v413 = vsel %vm98, %v393, 0
  %415 = vmatprep.subr.bf16.mxu0 0
  %416 = vmatpush1.bf16.xpose.msra.mxu0 0
  %417 = vmatprep.subr.bf16.mxu0 0
  %418 = vmatpush1.bf16.xpose.msra.mxu0 0
  %419 = vmatprep.subr.bf16.mxu0 0
  %420 = vmatpush1.bf16.xpose.msra.mxu0 0
  %421 = vmatprep.subr.bf16.mxu0 0
  %422 = vmatpush1.bf16.xpose.msra.mxu0 0
  %423 = vmatprep.subr.bf16.mxu0 0
  %424 = vmatpush1.bf16.xpose.msra.mxu0 0
  %425 = vmatprep.subr.bf16.mxu0 0
  %426 = vmatpush1.bf16.xpose.msra.mxu0 %v413
  %427 = vmatprep.subr.bf16.mxu0 0
  %428 = vmatpush1.bf16.xpose.msra.mxu0 %v410
  %429 = vmatprep.subr.bf16.mxu0 0
  %430 = vmatpush1.bf16.xpose.msra.mxu0 %v407
  %431 = vmatprep.subr.bf16.mxu0 0
  %432 = vmatpush2.bf16.xpose.msra.mxu0 0
  %433 = vmatprep.subr.bf16.mxu0 0
  %434 = vmatpush2.bf16.xpose.msra.mxu0 0
  %435 = vmatprep.subr.bf16.mxu0 0
  %436 = vmatpush2.bf16.xpose.msra.mxu0 0
  %437 = vmatprep.subr.bf16.mxu0 0
  %438 = vmatpush2.bf16.xpose.msra.mxu0 0
  %439 = vmatprep.subr.bf16.mxu0 0
  %440 = vmatpush2.bf16.xpose.msra.mxu0 0
  %441 = vmatprep.subr.bf16.mxu0 0
  %442 = vmatpush2.bf16.xpose.msra.mxu0 0
  %443 = vmatprep.subr.bf16.mxu0 0
  %444 = vmatpush2.bf16.xpose.msra.mxu0 0
  %445 = vmatprep.subr.bf16.mxu0 0
  %446 = vmatpush2.bf16.xpose.msra.mxu0 0
  %447 = vmatprep.mubr.bf16.mxu0 0
  %448 = vmatmul.mubr.bf16.gmra.mxu0 %v395
  %v449 = vpop.f32.mrf.mxu0
  %v450 = vadd.f32 0.0, %v449
  %v451 = vpop.f32.mrf.mxu0
  %v452 = vpop.f32.mrf.mxu0
  %v453 = vadd.f32 0.0, %v452
  %v454 = vpop.f32.mrf.mxu0
  %455 = vmatprep.mubr.bf16.mxu0 0
  %456 = vmatmul.mubr.bf16.gmra.mxu0 %v398
  %v457 = vpop.f32.mrf.mxu0
  %v458 = vadd.f32 0.0, %v457
  %v459 = vpop.f32.mrf.mxu0
  %v460 = vpop.f32.mrf.mxu0
  %v461 = vadd.f32 0.0, %v460
  %v462 = vpop.f32.mrf.mxu0
  %463 = vmatprep.mubr.bf16.mxu0 0
  %464 = vmatmul.mubr.bf16.gmra.mxu0 %v401
  %v465 = vpop.f32.mrf.mxu0
  %v466 = vadd.f32 0.0, %v465
  %v467 = vpop.f32.mrf.mxu0
  %v468 = vpop.f32.mrf.mxu0
  %v469 = vadd.f32 0.0, %v468
  %v470 = vpop.f32.mrf.mxu0
  %471 = vmatprep.mubr.bf16.mxu0 0
  %472 = vmatmul.mubr.bf16.gmra.mxu0 %v404
  %v473 = vpop.f32.mrf.mxu0
  %v474 = vadd.f32 0.0, %v473
  %v475 = vpop.f32.mrf.mxu0
  %v476 = vpop.f32.mrf.mxu0
  %v477 = vpop.f32.mrf.mxu0
  %478 = vdwg.mxu0
  %vm479 = vcmask 326656
  %480 = vst.msk [vmem:[#allocation2] sm:$0xff] %vm479, %v450
  %481 = vst.msk [vmem:[#allocation2 + $0x8] sm:$0xff] %vm479, %v453
  %482 = vst.msk [vmem:[#allocation2 + $0x10] sm:$0xff] %vm479, %v458
  %483 = vst.msk [vmem:[#allocation2 + $0x18] sm:$0xff] %vm479, %v461
  %484 = vst.msk [vmem:[#allocation2 + $0x20] sm:$0xff] %vm479, %v466
  %485 = vst.msk [vmem:[#allocation2 + $0x28] sm:$0xff] %vm479, %v469
  %vm486 = vcmask 320512
  %487 = vst.msk [vmem:[#allocation2 + $0x30] sm:$0x3] %vm486, %v474
  %v488 = vld [vmem:[#allocation2] sm:$0xff]
  %v489 = vld [vmem:[#allocation2 + $0x8] sm:$0xff]
  %v490 = vld [vmem:[#allocation2 + $0x10] sm:$0xff]
  %v491 = vld [vmem:[#allocation2 + $0x18] sm:$0xff]
  %v492 = vld [vmem:[#allocation2 + $0x20] sm:$0xff]
  %v493 = vld [vmem:[#allocation2 + $0x28] sm:$0xff]
  %v494 = vld [vmem:[#allocation2 + $0x30] sm:$0x3]
  %496 = vset.pattern.permute.xlu0 0
  %497 = vperm.xlu0 %496, %v341
  %v498 = vpop.permute.xlu0 %497
  %501 = vset.pattern.permute.xlu0 0
  %502 = vperm.xlu0 %501, %v346
  %v503 = vpop.permute.xlu0 %502
  %506 = vset.pattern.permute.xlu0 0
  %507 = vperm.xlu0 %506, %v351
  %v508 = vpop.permute.xlu0 %507
  %511 = vset.pattern.permute.xlu0 0
  %512 = vperm.xlu0 %511, %v356
  %v513 = vpop.permute.xlu0 %512
  %516 = vset.pattern.permute.xlu0 0
  %517 = vperm.xlu0 %516, %v361
  %v518 = vpop.permute.xlu0 %517
  %521 = vset.pattern.permute.xlu0 0
  %522 = vperm.xlu0 %521, %v366
  %v523 = vpop.permute.xlu0 %522
  %526 = vset.pattern.permute.xlu0 0
  %527 = vperm.xlu0 %526, %v371
  %v528 = vpop.permute.xlu0 %527
  %v530 = vadd.f32 %v488, %v498
  %v531 = vadd.f32 %v489, %v503
  %v532 = vadd.f32 %v490, %v508
  %v533 = vadd.f32 %v491, %v513
  %v534 = vadd.f32 %v492, %v518
  %v535 = vadd.f32 %v493, %v523
  %v536 = vadd.f32 %v494, %v528
  %vm537 = vcmask 80896
  %538 = vst.msk [vmem:[#allocation2] sm:$0xff] %vm537, %v530
  %539 = vst.msk [vmem:[#allocation2 + $0x8] sm:$0xff] %vm537, %v531
  %540 = vst.msk [vmem:[#allocation2 + $0x10] sm:$0xff] %vm537, %v532
  %541 = vst.msk [vmem:[#allocation2 + $0x18] sm:$0xff] %vm537, %v533
  %542 = vst.msk [vmem:[#allocation2 + $0x20] sm:$0xff] %vm537, %v534
  %543 = vst.msk [vmem:[#allocation2 + $0x28] sm:$0xff] %vm537, %v535
  %vm544 = vcmask 74752
  %545 = vst.msk [vmem:[#allocation2 + $0x30] sm:$0x3] %vm544, %v536
  %v546 = vld [vmem:[#allocation2] sm:$0xff]
  %v547 = vld [vmem:[#allocation2 + $0x8] sm:$0xff]
  %v548 = vld [vmem:[#allocation2 + $0x10] sm:$0xff]
  %v549 = vld [vmem:[#allocation2 + $0x18] sm:$0xff]
  %v550 = vld [vmem:[#allocation2 + $0x20] sm:$0xff]
  %v551 = vld [vmem:[#allocation2 + $0x28] sm:$0xff]
  %v552 = vld [vmem:[#allocation2 + $0x30] sm:$0x3]
  %553 = vset.pattern.permute.xlu0 1
  %554 = vperm.xlu0 %553, %v341
  %v555 = vpop.permute.xlu0 %554
  %557 = vset.pattern.permute.xlu0 1
  %558 = vperm.xlu0 %557, %v346
  %v559 = vpop.permute.xlu0 %558
  %561 = vset.pattern.permute.xlu0 1
  %562 = vperm.xlu0 %561, %v351
  %v563 = vpop.permute.xlu0 %562
  %565 = vset.pattern.permute.xlu0 1
  %566 = vperm.xlu0 %565, %v356
  %v567 = vpop.permute.xlu0 %566
  %569 = vset.pattern.permute.xlu0 1
  %570 = vperm.xlu0 %569, %v361
  %v571 = vpop.permute.xlu0 %570
  %573 = vset.pattern.permute.xlu0 1
  %574 = vperm.xlu0 %573, %v366
  %v575 = vpop.permute.xlu0 %574
  %577 = vset.pattern.permute.xlu0 1
  %578 = vperm.xlu0 %577, %v371
  %v579 = vpop.permute.xlu0 %578
  %v581 = vadd.f32 %v546, %v555
  %v582 = vadd.f32 %v547, %v559
  %v583 = vadd.f32 %v548, %v563
  %v584 = vadd.f32 %v549, %v567
  %v585 = vadd.f32 %v550, %v571
  %v586 = vadd.f32 %v551, %v575
  %v587 = vadd.f32 %v552, %v579
  %vm588 = vcmask 162896
  %589 = vst.msk [vmem:[#allocation2] sm:$0xff] %vm588, %v581
  %590 = vst.msk [vmem:[#allocation2 + $0x8] sm:$0xff] %vm588, %v582
  %591 = vst.msk [vmem:[#allocation2 + $0x10] sm:$0xff] %vm588, %v583
  %592 = vst.msk [vmem:[#allocation2 + $0x18] sm:$0xff] %vm588, %v584
  %593 = vst.msk [vmem:[#allocation2 + $0x20] sm:$0xff] %vm588, %v585
  %594 = vst.msk [vmem:[#allocation2 + $0x28] sm:$0xff] %vm588, %v586
  %vm595 = vcmask 156752
  %596 = vst.msk [vmem:[#allocation2 + $0x30] sm:$0x3] %vm595, %v587
  %v597 = vld [vmem:[#allocation2] sm:$0xff]
  %v598 = vld [vmem:[#allocation2 + $0x8] sm:$0xff]
  %v599 = vld [vmem:[#allocation2 + $0x10] sm:$0xff]
  %v600 = vld [vmem:[#allocation2 + $0x18] sm:$0xff]
  %v601 = vld [vmem:[#allocation2 + $0x20] sm:$0xff]
  %v602 = vld [vmem:[#allocation2 + $0x28] sm:$0xff]
  %v603 = vld [vmem:[#allocation2 + $0x30] sm:$0x3]
  %604 = vset.pattern.permute.xlu0 2
  %605 = vperm.xlu0 %604, %v341
  %v606 = vpop.permute.xlu0 %605
  %608 = vset.pattern.permute.xlu0 2
  %609 = vperm.xlu0 %608, %v346
  %v610 = vpop.permute.xlu0 %609
  %612 = vset.pattern.permute.xlu0 2
  %613 = vperm.xlu0 %612, %v351
  %v614 = vpop.permute.xlu0 %613
  %616 = vset.pattern.permute.xlu0 2
  %617 = vperm.xlu0 %616, %v356
  %v618 = vpop.permute.xlu0 %617
  %620 = vset.pattern.permute.xlu0 2
  %621 = vperm.xlu0 %620, %v361
  %v622 = vpop.permute.xlu0 %621
  %624 = vset.pattern.permute.xlu0 2
  %625 = vperm.xlu0 %624, %v366
  %v626 = vpop.permute.xlu0 %625
  %628 = vset.pattern.permute.xlu0 2
  %629 = vperm.xlu0 %628, %v371
  %v630 = vpop.permute.xlu0 %629
  %v632 = vadd.f32 %v597, %v606
  %v633 = vadd.f32 %v598, %v610
  %v634 = vadd.f32 %v599, %v614
  %v635 = vadd.f32 %v600, %v618
  %v636 = vadd.f32 %v601, %v622
  %v637 = vadd.f32 %v602, %v626
  %v638 = vadd.f32 %v603, %v630
  %vm639 = vcmask 244896
  %640 = vst.msk [vmem:[#allocation2] sm:$0xff] %vm639, %v632
  %641 = vst.msk [vmem:[#allocation2 + $0x8] sm:$0xff] %vm639, %v633
  %642 = vst.msk [vmem:[#allocation2 + $0x10] sm:$0xff] %vm639, %v634
  %643 = vst.msk [vmem:[#allocation2 + $0x18] sm:$0xff] %vm639, %v635
  %644 = vst.msk [vmem:[#allocation2 + $0x20] sm:$0xff] %vm639, %v636
  %645 = vst.msk [vmem:[#allocation2 + $0x28] sm:$0xff] %vm639, %v637
  %vm646 = vcmask 238752
  %647 = vst.msk [vmem:[#allocation2 + $0x30] sm:$0x3] %vm646, %v638
  %v648 = vld [vmem:[#allocation2] sm:$0xff]
  %v649 = vld [vmem:[#allocation2 + $0x8] sm:$0xff]
  %v650 = vld [vmem:[#allocation2 + $0x10] sm:$0xff]
  %v651 = vld [vmem:[#allocation2 + $0x18] sm:$0xff]
  %v652 = vld [vmem:[#allocation2 + $0x20] sm:$0xff]
  %v653 = vld [vmem:[#allocation2 + $0x28] sm:$0xff]
  %v654 = vld [vmem:[#allocation2 + $0x30] sm:$0x3]
  %655 = vset.pattern.permute.xlu0 3
  %656 = vperm.xlu0 %655, %v341
  %v657 = vpop.permute.xlu0 %656
  %659 = vset.pattern.permute.xlu0 3
  %660 = vperm.xlu0 %659, %v346
  %v661 = vpop.permute.xlu0 %660
  %663 = vset.pattern.permute.xlu0 3
  %664 = vperm.xlu0 %663, %v351
  %v665 = vpop.permute.xlu0 %664
  %667 = vset.pattern.permute.xlu0 3
  %668 = vperm.xlu0 %667, %v356
  %v669 = vpop.permute.xlu0 %668
  %671 = vset.pattern.permute.xlu0 3
  %672 = vperm.xlu0 %671, %v361
  %v673 = vpop.permute.xlu0 %672
  %675 = vset.pattern.permute.xlu0 3
  %676 = vperm.xlu0 %675, %v366
  %v677 = vpop.permute.xlu0 %676
  %679 = vset.pattern.permute.xlu0 3
  %680 = vperm.xlu0 %679, %v371
  %v681 = vpop.permute.xlu0 %680
  %v683 = vadd.f32 %v648, %v657
  %v684 = vadd.f32 %v649, %v661
  %v685 = vadd.f32 %v650, %v665
  %v686 = vadd.f32 %v651, %v669
  %v687 = vadd.f32 %v652, %v673
  %v688 = vadd.f32 %v653, %v677
  %v689 = vadd.f32 %v654, %v681
  %vm690 = vcmask 326896
  %691 = vst.msk [vmem:[#allocation2] sm:$0xff] %vm690, %v683
  %692 = vst.msk [vmem:[#allocation2 + $0x8] sm:$0xff] %vm690, %v684
  %693 = vst.msk [vmem:[#allocation2 + $0x10] sm:$0xff] %vm690, %v685
  %694 = vst.msk [vmem:[#allocation2 + $0x18] sm:$0xff] %vm690, %v686
  %695 = vst.msk [vmem:[#allocation2 + $0x20] sm:$0xff] %vm690, %v687
  %696 = vst.msk [vmem:[#allocation2 + $0x28] sm:$0xff] %vm690, %v688
  %vm697 = vcmask 320752
  %698 = vst.msk [vmem:[#allocation2 + $0x30] sm:$0x3] %vm697, %v689
  %v699 = vld [vmem:[#allocation2] sm:$0xff]
  %v700 = vld [vmem:[#allocation2 + $0x8] sm:$0xff]
  %v701 = vld [vmem:[#allocation2 + $0x10] sm:$0xff]
  %v702 = vld [vmem:[#allocation2 + $0x18] sm:$0xff]
  %v703 = vld [vmem:[#allocation2 + $0x20] sm:$0xff]
  %v704 = vld [vmem:[#allocation2 + $0x28] sm:$0xff]
  %v705 = vld [vmem:[#allocation2 + $0x30] sm:$0x3]
  %v706 = vld [vmem:[%s8] sm:$0xff]
  %v707 = vld [vmem:[%s8 + $0x8] sm:$0xff]
  %v708 = vld [vmem:[%s8 + $0x10] sm:$0xff]
  %v709 = vld [vmem:[%s8 + $0x18] sm:$0xff]
  %v710 = vld [vmem:[%s8 + $0x20] sm:$0xff]
  %v711 = vld [vmem:[%s8 + $0x28] sm:$0xff]
  %v712 = vld [vmem:[%s8 + $0x30] sm:$0x3]
  %v713 = vld [vmem:[%s9] sm:$0xff]
  %v714 = vld [vmem:[%s9 + $0x8] sm:$0xff]
  %v715 = vld [vmem:[%s9 + $0x10] sm:$0xff]
  %v716 = vld [vmem:[%s9 + $0x18] sm:$0xff]
  %v717 = vld [vmem:[%s9 + $0x20] sm:$0xff]
  %v718 = vld [vmem:[%s9 + $0x28] sm:$0xff]
  %v719 = vld [vmem:[%s9 + $0x30] sm:$0x3]
  %v720 = vsel %vm479, %v699, 0.0
  %721 = vadd.xlane.f32.xlu0 %v720
  %v722 = vpop.xlane.xlu0 %721
  %v723 = vsel %vm479, %v700, 0.0
  %724 = vadd.xlane.f32.xlu0 %v723
  %v725 = vpop.xlane.xlu0 %724
  %v726 = vsel %vm479, %v701, 0.0
  %727 = vadd.xlane.f32.xlu0 %v726
  %v728 = vpop.xlane.xlu0 %727
  %v729 = vsel %vm479, %v702, 0.0
  %730 = vadd.xlane.f32.xlu0 %v729
  %v731 = vpop.xlane.xlu0 %730
  %v732 = vsel %vm479, %v703, 0.0
  %733 = vadd.xlane.f32.xlu0 %v732
  %v734 = vpop.xlane.xlu0 %733
  %v735 = vsel %vm479, %v704, 0.0
  %736 = vadd.xlane.f32.xlu0 %v735
  %v737 = vpop.xlane.xlu0 %736
  %v738 = vsel %vm486, %v705, 0.0
  %739 = vadd.xlane.f32.xlu0 %v738
  %v740 = vpop.xlane.xlu0 %739
  %v741 = vmul.f32 %v699, %v699
  %v742 = vmul.f32 %v700, %v700
  %v743 = vmul.f32 %v701, %v701
  %v744 = vmul.f32 %v702, %v702
  %v745 = vmul.f32 %v703, %v703
  %v746 = vmul.f32 %v704, %v704
  %v747 = vmul.f32 %v705, %v705
  %v748 = vsel %vm479, %v741, 0.0
  %749 = vadd.xlane.f32.xlu0 %v748
  %v750 = vpop.xlane.xlu0 %749
  %v751 = vsel %vm479, %v742, 0.0
  %752 = vadd.xlane.f32.xlu0 %v751
  %v753 = vpop.xlane.xlu0 %752
  %v754 = vsel %vm479, %v743, 0.0
  %755 = vadd.xlane.f32.xlu0 %v754
  %v756 = vpop.xlane.xlu0 %755
  %v757 = vsel %vm479, %v744, 0.0
  %758 = vadd.xlane.f32.xlu0 %v757
  %v759 = vpop.xlane.xlu0 %758
  %v760 = vsel %vm479, %v745, 0.0
  %761 = vadd.xlane.f32.xlu0 %v760
  %v762 = vpop.xlane.xlu0 %761
  %v763 = vsel %vm479, %v746, 0.0
  %764 = vadd.xlane.f32.xlu0 %v763
  %v765 = vpop.xlane.xlu0 %764
  %v766 = vsel %vm486, %v747, 0.0
  %767 = vadd.xlane.f32.xlu0 %v766
  %v768 = vpop.xlane.xlu0 %767
  %v769 = vmul.f32 %v722, 0.025
  %v770 = vmul.f32 %v725, 0.025
  %v771 = vmul.f32 %v728, 0.025
  %v772 = vmul.f32 %v731, 0.025
  %v773 = vmul.f32 %v734, 0.025
  %v774 = vmul.f32 %v737, 0.025
  %v775 = vmul.f32 %v740, 0.025
  %v776 = vmul.f32 %v750, 0.025
  %v777 = vmul.f32 %v753, 0.025
  %v778 = vmul.f32 %v756, 0.025
  %v779 = vmul.f32 %v759, 0.025
  %v780 = vmul.f32 %v762, 0.025
  %v781 = vmul.f32 %v765, 0.025
  %v782 = vmul.f32 %v768, 0.025
  %v783 = vmul.f32 %v769, %v769
  %v784 = vmul.f32 %v770, %v770
  %v785 = vmul.f32 %v771, %v771
  %v786 = vmul.f32 %v772, %v772
  %v787 = vmul.f32 %v773, %v773
  %v788 = vmul.f32 %v774, %v774
  %v789 = vmul.f32 %v775, %v775
  %v790 = vsub.f32 %v776, %v783
  %v791 = vsub.f32 %v777, %v784
  %v792 = vsub.f32 %v778, %v785
  %v793 = vsub.f32 %v779, %v786
  %v794 = vsub.f32 %v780, %v787
  %v795 = vsub.f32 %v781, %v788
  %v796 = vsub.f32 %v782, %v789
  %v797 = vmax.f32 %v790, 0.0
  %v798 = vmax.f32 %v791, 0.0
  %v799 = vmax.f32 %v792, 0.0
  %v800 = vmax.f32 %v793, 0.0
  %v801 = vmax.f32 %v794, 0.0
  %v802 = vmax.f32 %v795, 0.0
  %v803 = vmax.f32 %v796, 0.0
  %v804 = vadd.f32 %v797, 1e-06
  %v805 = vadd.f32 %v798, 1e-06
  %v806 = vadd.f32 %v799, 1e-06
  %v807 = vadd.f32 %v800, 1e-06
  %v808 = vadd.f32 %v801, 1e-06
  %v809 = vadd.f32 %v802, 1e-06
  %v810 = vadd.f32 %v803, 1e-06
  %v811 = vrsqrt.pop %v804
  %v812 = vrsqrt.pop %v805
  %v813 = vrsqrt.pop %v806
  %v814 = vrsqrt.pop %v807
  %v815 = vrsqrt.pop %v808
  %v816 = vrsqrt.pop %v809
  %v817 = vrsqrt.pop %v810
  %v818 = vmul.f32 %v706, %v811
  %v819 = vmul.f32 %v707, %v812
  %v820 = vmul.f32 %v708, %v813
  %v821 = vmul.f32 %v709, %v814
  %v822 = vmul.f32 %v710, %v815
  %v823 = vmul.f32 %v711, %v816
  %v824 = vmul.f32 %v712, %v817
  %v825 = vmul.f32 %v769, %v818
  %v826 = vmul.f32 %v770, %v819
  %v827 = vmul.f32 %v771, %v820
  %v828 = vmul.f32 %v772, %v821
  %v829 = vmul.f32 %v773, %v822
  %v830 = vmul.f32 %v774, %v823
  %v831 = vmul.f32 %v775, %v824
  %v832 = vsub.f32 %v713, %v825
  %v833 = vsub.f32 %v714, %v826
  %v834 = vsub.f32 %v715, %v827
  %v835 = vsub.f32 %v716, %v828
  %v836 = vsub.f32 %v717, %v829
  %v837 = vsub.f32 %v718, %v830
  %v838 = vsub.f32 %v719, %v831
  %840 = vset.pattern.permute.xlu0 0
  %841 = vperm.xlu0 %840, %v818
  %v842 = vpop.permute.xlu0 %841
  %845 = vset.pattern.permute.xlu0 0
  %846 = vperm.xlu0 %845, %v819
  %v847 = vpop.permute.xlu0 %846
  %850 = vset.pattern.permute.xlu0 0
  %851 = vperm.xlu0 %850, %v820
  %v852 = vpop.permute.xlu0 %851
  %855 = vset.pattern.permute.xlu0 0
  %856 = vperm.xlu0 %855, %v821
  %v857 = vpop.permute.xlu0 %856
  %860 = vset.pattern.permute.xlu0 0
  %861 = vperm.xlu0 %860, %v822
  %v862 = vpop.permute.xlu0 %861
  %865 = vset.pattern.permute.xlu0 0
  %866 = vperm.xlu0 %865, %v823
  %v867 = vpop.permute.xlu0 %866
  %870 = vset.pattern.permute.xlu0 0
  %871 = vperm.xlu0 %870, %v824
  %v872 = vpop.permute.xlu0 %871
  %v874 = vmul.f32 %v699, %v842
  %v875 = vmul.f32 %v700, %v847
  %v876 = vmul.f32 %v701, %v852
  %v877 = vmul.f32 %v702, %v857
  %v878 = vmul.f32 %v703, %v862
  %v879 = vmul.f32 %v704, %v867
  %v880 = vmul.f32 %v705, %v872
  %882 = vset.pattern.permute.xlu0 0
  %883 = vperm.xlu0 %882, %v832
  %v884 = vpop.permute.xlu0 %883
  %887 = vset.pattern.permute.xlu0 0
  %888 = vperm.xlu0 %887, %v833
  %v889 = vpop.permute.xlu0 %888
  %892 = vset.pattern.permute.xlu0 0
  %893 = vperm.xlu0 %892, %v834
  %v894 = vpop.permute.xlu0 %893
  %897 = vset.pattern.permute.xlu0 0
  %898 = vperm.xlu0 %897, %v835
  %v899 = vpop.permute.xlu0 %898
  %902 = vset.pattern.permute.xlu0 0
  %903 = vperm.xlu0 %902, %v836
  %v904 = vpop.permute.xlu0 %903
  %907 = vset.pattern.permute.xlu0 0
  %908 = vperm.xlu0 %907, %v837
  %v909 = vpop.permute.xlu0 %908
  %912 = vset.pattern.permute.xlu0 0
  %913 = vperm.xlu0 %912, %v838
  %v914 = vpop.permute.xlu0 %913
  %v916 = vadd.f32 %v874, %v884
  %v917 = vadd.f32 %v875, %v889
  %v918 = vadd.f32 %v876, %v894
  %v919 = vadd.f32 %v877, %v899
  %v920 = vadd.f32 %v878, %v904
  %v921 = vadd.f32 %v879, %v909
  %v922 = vadd.f32 %v880, %v914
  %v923 = vmax.f32 %v916, 0.0
  %v924 = vmax.f32 %v917, 0.0
  %v925 = vmax.f32 %v918, 0.0
  %v926 = vmax.f32 %v919, 0.0
  %v927 = vmax.f32 %v920, 0.0
  %v928 = vmax.f32 %v921, 0.0
  %v929 = vmax.f32 %v922, 0.0
  %v930 = vpack.c.bf16 %v924, %v923
  %v931 = vpack.c.bf16 %v926, %v925
  %v932 = vpack.c.bf16 %v928, %v927
  %v933 = vpack.c.bf16 %v929, %v929
  %v934 = vld [vmem:[%s10] sm:$0xf]
  %v935 = vld [vmem:[%s10 + $0x4] sm:$0xf]
  %v936 = vld [vmem:[%s10 + $0x8] sm:$0xf]
  %v937 = vld [vmem:[%s10 + $0xc] sm:$0xf]
  %v938 = vld [vmem:[%s10 + $0x10] sm:$0xf]
  %v939 = vld [vmem:[%s10 + $0x14] sm:$0xf]
  %v940 = vld [vmem:[%s10 + $0x18] sm:$0xf]
  %v941 = vld [vmem:[%s10 + $0x1c] sm:$0xf]
  %v942 = vld [vmem:[%s10 + $0x20] sm:$0xf]
  %v943 = vld [vmem:[%s10 + $0x24] sm:$0xf]
  %v944 = vld [vmem:[%s10 + $0x28] sm:$0xf]
  %v945 = vld [vmem:[%s10 + $0x2c] sm:$0x1]
  %v958 = vunpack.c.l.b16 %v934
  %v959 = vunpack.c.l.b16 %v935
  %v960 = vunpack.c.l.b16 %v936
  %v961 = vunpack.c.l.b16 %v937
  %v962 = vunpack.c.l.b16 %v938
  %v963 = vunpack.c.l.b16 %v939
  %v964 = vunpack.c.l.b16 %v940
  %v965 = vunpack.c.l.b16 %v941
  %v966 = vunpack.c.l.b16 %v942
  %v967 = vunpack.c.l.b16 %v943
  %v968 = vunpack.c.l.b16 %v944
  %v969 = vunpack.c.l.b16 %v945
  %v970 = vpack.c.b16 %v959, %v958
  %v971 = vpack.c.b16 %v961, %v960
  %v972 = vpack.c.b16 %v963, %v962
  %v973 = vpack.c.b16 %v965, %v964
  %v974 = vpack.c.b16 %v967, %v966
  %v975 = vpack.c.b16 %v969, %v968
  %vm976 = vcmask 408576
  %v978 = vsel %vm976, %v970, 0
  %v981 = vsel %vm976, %v971, 0
  %v984 = vsel %vm976, %v972, 0
  %v987 = vsel %vm976, %v973, 0
  %v990 = vsel %vm976, %v974, 0
  %v993 = vsel %vm976, %v975, 0
  %vm995 = vcmask 1040384
  %v997 = vsel %vm995, %v933, 0
  %999 = vmatprep.subr.bf16.mxu0 0
  %1000 = vmatpush1.bf16.msra.mxu0 0
  %1001 = vmatprep.subr.bf16.mxu0 0
  %1002 = vmatpush1.bf16.msra.mxu0 0
  %1003 = vmatprep.subr.bf16.mxu0 0
  %1004 = vmatpush1.bf16.msra.mxu0 0
  %1005 = vmatprep.subr.bf16.mxu0 0
  %1006 = vmatpush1.bf16.msra.mxu0 0
  %1007 = vmatprep.subr.bf16.mxu0 0
  %1008 = vmatpush1.bf16.msra.mxu0 %v997
  %1009 = vmatprep.subr.bf16.mxu0 0
  %1010 = vmatpush1.bf16.msra.mxu0 %v932
  %1011 = vmatprep.subr.bf16.mxu0 0
  %1012 = vmatpush1.bf16.msra.mxu0 %v931
  %1013 = vmatprep.subr.bf16.mxu0 0
  %1014 = vmatpush1.bf16.msra.mxu0 %v930
  %1015 = vmatprep.subr.bf16.mxu0 0
  %1016 = vmatpush2.bf16.msra.mxu0 0
  %1017 = vmatprep.subr.bf16.mxu0 0
  %1018 = vmatpush2.bf16.msra.mxu0 0
  %1019 = vmatprep.subr.bf16.mxu0 0
  %1020 = vmatpush2.bf16.msra.mxu0 0
  %1021 = vmatprep.subr.bf16.mxu0 0
  %1022 = vmatpush2.bf16.msra.mxu0 0
  %1023 = vmatprep.subr.bf16.mxu0 0
  %1024 = vmatpush2.bf16.msra.mxu0 0
  %1025 = vmatprep.subr.bf16.mxu0 0
  %1026 = vmatpush2.bf16.msra.mxu0 0
  %1027 = vmatprep.subr.bf16.mxu0 0
  %1028 = vmatpush2.bf16.msra.mxu0 0
  %1029 = vmatprep.subr.bf16.mxu0 0
  %1030 = vmatpush2.bf16.msra.mxu0 0
  %1031 = vmatprep.mubr.bf16.mxu0 0
  %1032 = vmatmul.mubr.bf16.gmra.mxu0 %v978
  %v1033 = vpop.f32.mrf.mxu0
  %v1034 = vadd.f32 0.0, %v1033
  %v1035 = vpop.f32.mrf.mxu0
  %v1036 = vpop.f32.mrf.mxu0
  %v1037 = vadd.f32 0.0, %v1036
  %v1038 = vpop.f32.mrf.mxu0
  %1039 = vmatprep.mubr.bf16.mxu0 0
  %1040 = vmatmul.mubr.bf16.gmra.mxu0 %v981
  %v1041 = vpop.f32.mrf.mxu0
  %v1042 = vadd.f32 0.0, %v1041
  %v1043 = vpop.f32.mrf.mxu0
  %v1044 = vpop.f32.mrf.mxu0
  %v1045 = vadd.f32 0.0, %v1044
  %v1046 = vpop.f32.mrf.mxu0
  %1047 = vmatprep.mubr.bf16.mxu0 0
  %1048 = vmatmul.mubr.bf16.gmra.mxu0 %v984
  %v1049 = vpop.f32.mrf.mxu0
  %v1050 = vadd.f32 0.0, %v1049
  %v1051 = vpop.f32.mrf.mxu0
  %v1052 = vpop.f32.mrf.mxu0
  %v1053 = vadd.f32 0.0, %v1052
  %v1054 = vpop.f32.mrf.mxu0
  %1055 = vmatprep.mubr.bf16.mxu0 0
  %1056 = vmatmul.mubr.bf16.gmra.mxu0 %v987
  %v1057 = vpop.f32.mrf.mxu0
  %v1058 = vadd.f32 0.0, %v1057
  %v1059 = vpop.f32.mrf.mxu0
  %v1060 = vpop.f32.mrf.mxu0
  %v1061 = vadd.f32 0.0, %v1060
  %v1062 = vpop.f32.mrf.mxu0
  %1063 = vmatprep.mubr.bf16.mxu0 0
  %1064 = vmatmul.mubr.bf16.gmra.mxu0 %v990
  %v1065 = vpop.f32.mrf.mxu0
  %v1066 = vadd.f32 0.0, %v1065
  %v1067 = vpop.f32.mrf.mxu0
  %v1068 = vpop.f32.mrf.mxu0
  %v1069 = vadd.f32 0.0, %v1068
  %v1070 = vpop.f32.mrf.mxu0
  %1071 = vmatprep.mubr.bf16.mxu0 0
  %1072 = vmatmul.mubr.bf16.gmra.mxu0 %v993
  %v1073 = vpop.f32.mrf.mxu0
  %v1074 = vadd.f32 0.0, %v1073
  %v1075 = vpop.f32.mrf.mxu0
  %v1076 = vpop.f32.mrf.mxu0
  %v1077 = vadd.f32 0.0, %v1076
  %v1078 = vpop.f32.mrf.mxu0
  %1079 = vdwg.mxu0
  %v1080 = vld [vmem:[%s11] sm:$0xff]
  %v1081 = vld [vmem:[%s11 + $0x8] sm:$0xff]
  %v1082 = vld [vmem:[%s11 + $0x10] sm:$0xff]
  %v1083 = vld [vmem:[%s11 + $0x18] sm:$0xff]
  %v1084 = vld [vmem:[%s11 + $0x20] sm:$0xff]
  %v1085 = vld [vmem:[%s11 + $0x28] sm:$0xff]
  %v1086 = vld [vmem:[%s11 + $0x30] sm:$0xff]
  %v1087 = vld [vmem:[%s11 + $0x38] sm:$0xff]
  %v1088 = vld [vmem:[%s11 + $0x40] sm:$0xff]
  %v1089 = vld [vmem:[%s11 + $0x48] sm:$0xff]
  %v1090 = vld [vmem:[%s11 + $0x50] sm:$0xff]
  %v1091 = vld [vmem:[%s11 + $0x58] sm:$0x3]
  %v1092 = vld [vmem:[%s12] sm:$0xff]
  %v1093 = vld [vmem:[%s12 + $0x8] sm:$0xff]
  %v1094 = vld [vmem:[%s12 + $0x10] sm:$0xff]
  %v1095 = vld [vmem:[%s12 + $0x18] sm:$0xff]
  %v1096 = vld [vmem:[%s12 + $0x20] sm:$0xff]
  %v1097 = vld [vmem:[%s12 + $0x28] sm:$0xff]
  %v1098 = vld [vmem:[%s12 + $0x30] sm:$0xff]
  %v1099 = vld [vmem:[%s12 + $0x38] sm:$0xff]
  %v1100 = vld [vmem:[%s12 + $0x40] sm:$0xff]
  %v1101 = vld [vmem:[%s12 + $0x48] sm:$0xff]
  %v1102 = vld [vmem:[%s12 + $0x50] sm:$0xff]
  %v1103 = vld [vmem:[%s12 + $0x58] sm:$0x3]
  %v1104 = vsel %vm479, %v1034, 0.0
  %1105 = vadd.xlane.f32.xlu0 %v1104
  %v1106 = vpop.xlane.xlu0 %1105
  %v1107 = vsel %vm479, %v1037, 0.0
  %1108 = vadd.xlane.f32.xlu0 %v1107
  %v1109 = vpop.xlane.xlu0 %1108
  %v1110 = vsel %vm479, %v1042, 0.0
  %1111 = vadd.xlane.f32.xlu0 %v1110
  %v1112 = vpop.xlane.xlu0 %1111
  %v1113 = vsel %vm479, %v1045, 0.0
  %1114 = vadd.xlane.f32.xlu0 %v1113
  %v1115 = vpop.xlane.xlu0 %1114
  %v1116 = vsel %vm479, %v1050, 0.0
  %1117 = vadd.xlane.f32.xlu0 %v1116
  %v1118 = vpop.xlane.xlu0 %1117
  %v1119 = vsel %vm479, %v1053, 0.0
  %1120 = vadd.xlane.f32.xlu0 %v1119
  %v1121 = vpop.xlane.xlu0 %1120
  %v1122 = vsel %vm479, %v1058, 0.0
  %1123 = vadd.xlane.f32.xlu0 %v1122
  %v1124 = vpop.xlane.xlu0 %1123
  %v1125 = vsel %vm479, %v1061, 0.0
  %1126 = vadd.xlane.f32.xlu0 %v1125
  %v1127 = vpop.xlane.xlu0 %1126
  %v1128 = vsel %vm479, %v1066, 0.0
  %1129 = vadd.xlane.f32.xlu0 %v1128
  %v1130 = vpop.xlane.xlu0 %1129
  %v1131 = vsel %vm479, %v1069, 0.0
  %1132 = vadd.xlane.f32.xlu0 %v1131
  %v1133 = vpop.xlane.xlu0 %1132
  %v1134 = vsel %vm479, %v1074, 0.0
  %1135 = vadd.xlane.f32.xlu0 %v1134
  %v1136 = vpop.xlane.xlu0 %1135
  %v1137 = vsel %vm486, %v1077, 0.0
  %1138 = vadd.xlane.f32.xlu0 %v1137
  %v1139 = vpop.xlane.xlu0 %1138
  %v1140 = vmul.f32 %v1034, %v1034
  %v1141 = vmul.f32 %v1037, %v1037
  %v1142 = vmul.f32 %v1042, %v1042
  %v1143 = vmul.f32 %v1045, %v1045
  %v1144 = vmul.f32 %v1050, %v1050
  %v1145 = vmul.f32 %v1053, %v1053
  %v1146 = vmul.f32 %v1058, %v1058
  %v1147 = vmul.f32 %v1061, %v1061
  %v1148 = vmul.f32 %v1066, %v1066
  %v1149 = vmul.f32 %v1069, %v1069
  %v1150 = vmul.f32 %v1074, %v1074
  %v1151 = vmul.f32 %v1077, %v1077
  %v1152 = vsel %vm479, %v1140, 0.0
  %1153 = vadd.xlane.f32.xlu0 %v1152
  %v1154 = vpop.xlane.xlu0 %1153
  %v1155 = vsel %vm479, %v1141, 0.0
  %1156 = vadd.xlane.f32.xlu0 %v1155
  %v1157 = vpop.xlane.xlu0 %1156
  %v1158 = vsel %vm479, %v1142, 0.0
  %1159 = vadd.xlane.f32.xlu0 %v1158
  %v1160 = vpop.xlane.xlu0 %1159
  %v1161 = vsel %vm479, %v1143, 0.0
  %1162 = vadd.xlane.f32.xlu0 %v1161
  %v1163 = vpop.xlane.xlu0 %1162
  %v1164 = vsel %vm479, %v1144, 0.0
  %1165 = vadd.xlane.f32.xlu0 %v1164
  %v1166 = vpop.xlane.xlu0 %1165
  %v1167 = vsel %vm479, %v1145, 0.0
  %1168 = vadd.xlane.f32.xlu0 %v1167
  %v1169 = vpop.xlane.xlu0 %1168
  %v1170 = vsel %vm479, %v1146, 0.0
  %1171 = vadd.xlane.f32.xlu0 %v1170
  %v1172 = vpop.xlane.xlu0 %1171
  %v1173 = vsel %vm479, %v1147, 0.0
  %1174 = vadd.xlane.f32.xlu0 %v1173
  %v1175 = vpop.xlane.xlu0 %1174
  %v1176 = vsel %vm479, %v1148, 0.0
  %1177 = vadd.xlane.f32.xlu0 %v1176
  %v1178 = vpop.xlane.xlu0 %1177
  %v1179 = vsel %vm479, %v1149, 0.0
  %1180 = vadd.xlane.f32.xlu0 %v1179
  %v1181 = vpop.xlane.xlu0 %1180
  %v1182 = vsel %vm479, %v1150, 0.0
  %1183 = vadd.xlane.f32.xlu0 %v1182
  %v1184 = vpop.xlane.xlu0 %1183
  %v1185 = vsel %vm486, %v1151, 0.0
  %1186 = vadd.xlane.f32.xlu0 %v1185
  %v1187 = vpop.xlane.xlu0 %1186
  %v1188 = vmul.f32 %v1106, 0.025
  %v1189 = vmul.f32 %v1109, 0.025
  %v1190 = vmul.f32 %v1112, 0.025
  %v1191 = vmul.f32 %v1115, 0.025
  %v1192 = vmul.f32 %v1118, 0.025
  %v1193 = vmul.f32 %v1121, 0.025
  %v1194 = vmul.f32 %v1124, 0.025
  %v1195 = vmul.f32 %v1127, 0.025
  %v1196 = vmul.f32 %v1130, 0.025
  %v1197 = vmul.f32 %v1133, 0.025
  %v1198 = vmul.f32 %v1136, 0.025
  %v1199 = vmul.f32 %v1139, 0.025
  %v1200 = vmul.f32 %v1154, 0.025
  %v1201 = vmul.f32 %v1157, 0.025
  %v1202 = vmul.f32 %v1160, 0.025
  %v1203 = vmul.f32 %v1163, 0.025
  %v1204 = vmul.f32 %v1166, 0.025
  %v1205 = vmul.f32 %v1169, 0.025
  %v1206 = vmul.f32 %v1172, 0.025
  %v1207 = vmul.f32 %v1175, 0.025
  %v1208 = vmul.f32 %v1178, 0.025
  %v1209 = vmul.f32 %v1181, 0.025
  %v1210 = vmul.f32 %v1184, 0.025
  %v1211 = vmul.f32 %v1187, 0.025
  %v1212 = vmul.f32 %v1188, %v1188
  %v1213 = vmul.f32 %v1189, %v1189
  %v1214 = vmul.f32 %v1190, %v1190
  %v1215 = vmul.f32 %v1191, %v1191
  %v1216 = vmul.f32 %v1192, %v1192
  %v1217 = vmul.f32 %v1193, %v1193
  %v1218 = vmul.f32 %v1194, %v1194
  %v1219 = vmul.f32 %v1195, %v1195
  %v1220 = vmul.f32 %v1196, %v1196
  %v1221 = vmul.f32 %v1197, %v1197
  %v1222 = vmul.f32 %v1198, %v1198
  %v1223 = vmul.f32 %v1199, %v1199
  %v1224 = vsub.f32 %v1200, %v1212
  %v1225 = vsub.f32 %v1201, %v1213
  %v1226 = vsub.f32 %v1202, %v1214
  %v1227 = vsub.f32 %v1203, %v1215
  %v1228 = vsub.f32 %v1204, %v1216
  %v1229 = vsub.f32 %v1205, %v1217
  %v1230 = vsub.f32 %v1206, %v1218
  %v1231 = vsub.f32 %v1207, %v1219
  %v1232 = vsub.f32 %v1208, %v1220
  %v1233 = vsub.f32 %v1209, %v1221
  %v1234 = vsub.f32 %v1210, %v1222
  %v1235 = vsub.f32 %v1211, %v1223
  %v1236 = vmax.f32 %v1224, 0.0
  %v1237 = vmax.f32 %v1225, 0.0
  %v1238 = vmax.f32 %v1226, 0.0
  %v1239 = vmax.f32 %v1227, 0.0
  %v1240 = vmax.f32 %v1228, 0.0
  %v1241 = vmax.f32 %v1229, 0.0
  %v1242 = vmax.f32 %v1230, 0.0
  %v1243 = vmax.f32 %v1231, 0.0
  %v1244 = vmax.f32 %v1232, 0.0
  %v1245 = vmax.f32 %v1233, 0.0
  %v1246 = vmax.f32 %v1234, 0.0
  %v1247 = vmax.f32 %v1235, 0.0
  %v1248 = vadd.f32 %v1236, 1e-06
  %v1249 = vadd.f32 %v1237, 1e-06
  %v1250 = vadd.f32 %v1238, 1e-06
  %v1251 = vadd.f32 %v1239, 1e-06
  %v1252 = vadd.f32 %v1240, 1e-06
  %v1253 = vadd.f32 %v1241, 1e-06
  %v1254 = vadd.f32 %v1242, 1e-06
  %v1255 = vadd.f32 %v1243, 1e-06
  %v1256 = vadd.f32 %v1244, 1e-06
  %v1257 = vadd.f32 %v1245, 1e-06
  %v1258 = vadd.f32 %v1246, 1e-06
  %v1259 = vadd.f32 %v1247, 1e-06
  %v1260 = vrsqrt.pop %v1248
  %v1261 = vrsqrt.pop %v1249
  %v1262 = vrsqrt.pop %v1250
  %v1263 = vrsqrt.pop %v1251
  %v1264 = vrsqrt.pop %v1252
  %v1265 = vrsqrt.pop %v1253
  %v1266 = vrsqrt.pop %v1254
  %v1267 = vrsqrt.pop %v1255
  %v1268 = vrsqrt.pop %v1256
  %v1269 = vrsqrt.pop %v1257
  %v1270 = vrsqrt.pop %v1258
  %v1271 = vrsqrt.pop %v1259
  %v1272 = vmul.f32 %v1080, %v1260
  %v1273 = vmul.f32 %v1081, %v1261
  %v1274 = vmul.f32 %v1082, %v1262
  %v1275 = vmul.f32 %v1083, %v1263
  %v1276 = vmul.f32 %v1084, %v1264
  %v1277 = vmul.f32 %v1085, %v1265
  %v1278 = vmul.f32 %v1086, %v1266
  %v1279 = vmul.f32 %v1087, %v1267
  %v1280 = vmul.f32 %v1088, %v1268
  %v1281 = vmul.f32 %v1089, %v1269
  %v1282 = vmul.f32 %v1090, %v1270
  %v1283 = vmul.f32 %v1091, %v1271
  %v1284 = vmul.f32 %v1188, %v1272
  %v1285 = vmul.f32 %v1189, %v1273
  %v1286 = vmul.f32 %v1190, %v1274
  %v1287 = vmul.f32 %v1191, %v1275
  %v1288 = vmul.f32 %v1192, %v1276
  %v1289 = vmul.f32 %v1193, %v1277
  %v1290 = vmul.f32 %v1194, %v1278
  %v1291 = vmul.f32 %v1195, %v1279
  %v1292 = vmul.f32 %v1196, %v1280
  %v1293 = vmul.f32 %v1197, %v1281
  %v1294 = vmul.f32 %v1198, %v1282
  %v1295 = vmul.f32 %v1199, %v1283
  %v1296 = vsub.f32 %v1092, %v1284
  %v1297 = vsub.f32 %v1093, %v1285
  %v1298 = vsub.f32 %v1094, %v1286
  %v1299 = vsub.f32 %v1095, %v1287
  %v1300 = vsub.f32 %v1096, %v1288
  %v1301 = vsub.f32 %v1097, %v1289
  %v1302 = vsub.f32 %v1098, %v1290
  %v1303 = vsub.f32 %v1099, %v1291
  %v1304 = vsub.f32 %v1100, %v1292
  %v1305 = vsub.f32 %v1101, %v1293
  %v1306 = vsub.f32 %v1102, %v1294
  %v1307 = vsub.f32 %v1103, %v1295
  %1309 = vset.pattern.permute.xlu0 0
  %1310 = vperm.xlu0 %1309, %v1272
  %v1311 = vpop.permute.xlu0 %1310
  %1314 = vset.pattern.permute.xlu0 0
  %1315 = vperm.xlu0 %1314, %v1273
  %v1316 = vpop.permute.xlu0 %1315
  %1319 = vset.pattern.permute.xlu0 0
  %1320 = vperm.xlu0 %1319, %v1274
  %v1321 = vpop.permute.xlu0 %1320
  %1324 = vset.pattern.permute.xlu0 0
  %1325 = vperm.xlu0 %1324, %v1275
  %v1326 = vpop.permute.xlu0 %1325
  %1329 = vset.pattern.permute.xlu0 0
  %1330 = vperm.xlu0 %1329, %v1276
  %v1331 = vpop.permute.xlu0 %1330
  %1334 = vset.pattern.permute.xlu0 0
  %1335 = vperm.xlu0 %1334, %v1277
  %v1336 = vpop.permute.xlu0 %1335
  %1339 = vset.pattern.permute.xlu0 0
  %1340 = vperm.xlu0 %1339, %v1278
  %v1341 = vpop.permute.xlu0 %1340
  %1344 = vset.pattern.permute.xlu0 0
  %1345 = vperm.xlu0 %1344, %v1279
  %v1346 = vpop.permute.xlu0 %1345
  %1349 = vset.pattern.permute.xlu0 0
  %1350 = vperm.xlu0 %1349, %v1280
  %v1351 = vpop.permute.xlu0 %1350
  %1354 = vset.pattern.permute.xlu0 0
  %1355 = vperm.xlu0 %1354, %v1281
  %v1356 = vpop.permute.xlu0 %1355
  %1359 = vset.pattern.permute.xlu0 0
  %1360 = vperm.xlu0 %1359, %v1282
  %v1361 = vpop.permute.xlu0 %1360
  %1364 = vset.pattern.permute.xlu0 0
  %1365 = vperm.xlu0 %1364, %v1283
  %v1366 = vpop.permute.xlu0 %1365
  %v1368 = vmul.f32 %v1034, %v1311
  %v1369 = vmul.f32 %v1037, %v1316
  %v1370 = vmul.f32 %v1042, %v1321
  %v1371 = vmul.f32 %v1045, %v1326
  %v1372 = vmul.f32 %v1050, %v1331
  %v1373 = vmul.f32 %v1053, %v1336
  %v1374 = vmul.f32 %v1058, %v1341
  %v1375 = vmul.f32 %v1061, %v1346
  %v1376 = vmul.f32 %v1066, %v1351
  %v1377 = vmul.f32 %v1069, %v1356
  %v1378 = vmul.f32 %v1074, %v1361
  %v1379 = vmul.f32 %v1077, %v1366
  %1381 = vset.pattern.permute.xlu0 0
  %1382 = vperm.xlu0 %1381, %v1296
  %v1383 = vpop.permute.xlu0 %1382
  %1386 = vset.pattern.permute.xlu0 0
  %1387 = vperm.xlu0 %1386, %v1297
  %v1388 = vpop.permute.xlu0 %1387
  %1391 = vset.pattern.permute.xlu0 0
  %1392 = vperm.xlu0 %1391, %v1298
  %v1393 = vpop.permute.xlu0 %1392
  %1396 = vset.pattern.permute.xlu0 0
  %1397 = vperm.xlu0 %1396, %v1299
  %v1398 = vpop.permute.xlu0 %1397
  %1401 = vset.pattern.permute.xlu0 0
  %1402 = vperm.xlu0 %1401, %v1300
  %v1403 = vpop.permute.xlu0 %1402
  %1406 = vset.pattern.permute.xlu0 0
  %1407 = vperm.xlu0 %1406, %v1301
  %v1408 = vpop.permute.xlu0 %1407
  %1411 = vset.pattern.permute.xlu0 0
  %1412 = vperm.xlu0 %1411, %v1302
  %v1413 = vpop.permute.xlu0 %1412
  %1416 = vset.pattern.permute.xlu0 0
  %1417 = vperm.xlu0 %1416, %v1303
  %v1418 = vpop.permute.xlu0 %1417
  %1421 = vset.pattern.permute.xlu0 0
  %1422 = vperm.xlu0 %1421, %v1304
  %v1423 = vpop.permute.xlu0 %1422
  %1426 = vset.pattern.permute.xlu0 0
  %1427 = vperm.xlu0 %1426, %v1305
  %v1428 = vpop.permute.xlu0 %1427
  %1431 = vset.pattern.permute.xlu0 0
  %1432 = vperm.xlu0 %1431, %v1306
  %v1433 = vpop.permute.xlu0 %1432
  %1436 = vset.pattern.permute.xlu0 0
  %1437 = vperm.xlu0 %1436, %v1307
  %v1438 = vpop.permute.xlu0 %1437
  %v1440 = vadd.f32 %v1368, %v1383
  %v1441 = vadd.f32 %v1369, %v1388
  %v1442 = vadd.f32 %v1370, %v1393
  %v1443 = vadd.f32 %v1371, %v1398
  %v1444 = vadd.f32 %v1372, %v1403
  %v1445 = vadd.f32 %v1373, %v1408
  %v1446 = vadd.f32 %v1374, %v1413
  %v1447 = vadd.f32 %v1375, %v1418
  %v1448 = vadd.f32 %v1376, %v1423
  %v1449 = vadd.f32 %v1377, %v1428
  %v1450 = vadd.f32 %v1378, %v1433
  %v1451 = vadd.f32 %v1379, %v1438
  %v1452 = vmax.f32 %v1440, 0.0
  %v1453 = vmax.f32 %v1441, 0.0
  %v1454 = vmax.f32 %v1442, 0.0
  %v1455 = vmax.f32 %v1443, 0.0
  %v1456 = vmax.f32 %v1444, 0.0
  %v1457 = vmax.f32 %v1445, 0.0
  %v1458 = vmax.f32 %v1446, 0.0
  %v1459 = vmax.f32 %v1447, 0.0
  %v1460 = vmax.f32 %v1448, 0.0
  %v1461 = vmax.f32 %v1449, 0.0
  %v1462 = vmax.f32 %v1450, 0.0
  %v1463 = vmax.f32 %v1451, 0.0
  %v1464 = vpack.c.bf16 %v1453, %v1452
  %v1465 = vpack.c.bf16 %v1455, %v1454
  %v1466 = vpack.c.bf16 %v1457, %v1456
  %v1467 = vpack.c.bf16 %v1459, %v1458
  %v1468 = vpack.c.bf16 %v1461, %v1460
  %v1469 = vpack.c.bf16 %v1463, %v1462
  %v1470 = vld [vmem:[%s13] sm:$0xf]
  %v1471 = vld [vmem:[%s13 + $0x4] sm:$0xf]
  %v1472 = vld [vmem:[%s13 + $0x8] sm:$0xf]
  %v1473 = vld [vmem:[%s13 + $0xc] sm:$0xf]
  %v1474 = vld [vmem:[%s13 + $0x10] sm:$0xf]
  %v1475 = vld [vmem:[%s13 + $0x14] sm:$0xf]
  %v1476 = vld [vmem:[%s13 + $0x18] sm:$0x1]
  %v1484 = vunpack.c.l.b16 %v1470
  %v1485 = vunpack.c.l.b16 %v1471
  %v1486 = vunpack.c.l.b16 %v1472
  %v1487 = vunpack.c.l.b16 %v1473
  %v1488 = vunpack.c.l.b16 %v1474
  %v1489 = vunpack.c.l.b16 %v1475
  %v1490 = vunpack.c.l.b16 %v1476
  %v1491 = vpack.c.b16 %v1485, %v1484
  %v1492 = vpack.c.b16 %v1487, %v1486
  %v1493 = vpack.c.b16 %v1489, %v1488
  %v1494 = vpack.c.b16 %v1490, %v1490
  %vm1495 = vcmask 736256
  %v1497 = vsel %vm1495, %v1491, 0
  %v1500 = vsel %vm1495, %v1492, 0
  %v1503 = vsel %vm1495, %v1493, 0
  %v1506 = vsel %vm1495, %v1494, 0
  %vm1508 = vcmask 1044480
  %v1510 = vsel %vm1508, %v1469, 0
  %1512 = vmatprep.subr.bf16.mxu0 0
  %1513 = vmatpush1.bf16.msra.mxu0 0
  %1514 = vmatprep.subr.bf16.mxu0 0
  %1515 = vmatpush1.bf16.msra.mxu0 0
  %1516 = vmatprep.subr.bf16.mxu0 0
  %1517 = vmatpush1.bf16.msra.mxu0 %v1510
  %1518 = vmatprep.subr.bf16.mxu0 0
  %1519 = vmatpush1.bf16.msra.mxu0 %v1468
  %1520 = vmatprep.subr.bf16.mxu0 0
  %1521 = vmatpush1.bf16.msra.mxu0 %v1467
  %1522 = vmatprep.subr.bf16.mxu0 0
  %1523 = vmatpush1.bf16.msra.mxu0 %v1466
  %1524 = vmatprep.subr.bf16.mxu0 0
  %1525 = vmatpush1.bf16.msra.mxu0 %v1465
  %1526 = vmatprep.subr.bf16.mxu0 0
  %1527 = vmatpush1.bf16.msra.mxu0 %v1464
  %1528 = vmatprep.subr.bf16.mxu0 0
  %1529 = vmatpush2.bf16.msra.mxu0 0
  %1530 = vmatprep.subr.bf16.mxu0 0
  %1531 = vmatpush2.bf16.msra.mxu0 0
  %1532 = vmatprep.subr.bf16.mxu0 0
  %1533 = vmatpush2.bf16.msra.mxu0 0
  %1534 = vmatprep.subr.bf16.mxu0 0
  %1535 = vmatpush2.bf16.msra.mxu0 0
  %1536 = vmatprep.subr.bf16.mxu0 0
  %1537 = vmatpush2.bf16.msra.mxu0 0
  %1538 = vmatprep.subr.bf16.mxu0 0
  %1539 = vmatpush2.bf16.msra.mxu0 0
  %1540 = vmatprep.subr.bf16.mxu0 0
  %1541 = vmatpush2.bf16.msra.mxu0 0
  %1542 = vmatprep.subr.bf16.mxu0 0
  %1543 = vmatpush2.bf16.msra.mxu0 0
  %1544 = vmatprep.mubr.bf16.mxu0 0
  %1545 = vmatmul.mubr.bf16.gmra.mxu0 %v1497
  %v1546 = vpop.f32.mrf.mxu0
  %v1547 = vadd.f32 0.0, %v1546
  %v1548 = vpop.f32.mrf.mxu0
  %v1549 = vpop.f32.mrf.mxu0
  %v1550 = vadd.f32 0.0, %v1549
  %v1551 = vpop.f32.mrf.mxu0
  %1552 = vmatprep.mubr.bf16.mxu0 0
  %1553 = vmatmul.mubr.bf16.gmra.mxu0 %v1500
  %v1554 = vpop.f32.mrf.mxu0
  %v1555 = vadd.f32 0.0, %v1554
  %v1556 = vpop.f32.mrf.mxu0
  %v1557 = vpop.f32.mrf.mxu0
  %v1558 = vadd.f32 0.0, %v1557
  %v1559 = vpop.f32.mrf.mxu0
  %1560 = vmatprep.mubr.bf16.mxu0 0
  %1561 = vmatmul.mubr.bf16.gmra.mxu0 %v1503
  %v1562 = vpop.f32.mrf.mxu0
  %v1563 = vadd.f32 0.0, %v1562
  %v1564 = vpop.f32.mrf.mxu0
  %v1565 = vpop.f32.mrf.mxu0
  %v1566 = vadd.f32 0.0, %v1565
  %v1567 = vpop.f32.mrf.mxu0
  %1568 = vmatprep.mubr.bf16.mxu0 0
  %1569 = vmatmul.mubr.bf16.gmra.mxu0 %v1506
  %v1570 = vpop.f32.mrf.mxu0
  %v1571 = vadd.f32 0.0, %v1570
  %v1572 = vpop.f32.mrf.mxu0
  %v1573 = vpop.f32.mrf.mxu0
  %v1574 = vpop.f32.mrf.mxu0
  %1575 = vdwg.mxu0
  %v1576 = vld [vmem:[%s14] sm:$0xff]
  %v1577 = vld [vmem:[%s14 + $0x8] sm:$0xff]
  %v1578 = vld [vmem:[%s14 + $0x10] sm:$0xff]
  %v1579 = vld [vmem:[%s14 + $0x18] sm:$0xff]
  %v1580 = vld [vmem:[%s14 + $0x20] sm:$0xff]
  %v1581 = vld [vmem:[%s14 + $0x28] sm:$0xff]
  %v1582 = vld [vmem:[%s14 + $0x30] sm:$0x3]
  %v1583 = vld [vmem:[%s15] sm:$0xff]
  %v1584 = vld [vmem:[%s15 + $0x8] sm:$0xff]
  %v1585 = vld [vmem:[%s15 + $0x10] sm:$0xff]
  %v1586 = vld [vmem:[%s15 + $0x18] sm:$0xff]
  %v1587 = vld [vmem:[%s15 + $0x20] sm:$0xff]
  %v1588 = vld [vmem:[%s15 + $0x28] sm:$0xff]
  %v1589 = vld [vmem:[%s15 + $0x30] sm:$0x3]
  %v1590 = vsel %vm479, %v1547, 0.0
  %1591 = vadd.xlane.f32.xlu0 %v1590
  %v1592 = vpop.xlane.xlu0 %1591
  %v1593 = vsel %vm479, %v1550, 0.0
  %1594 = vadd.xlane.f32.xlu0 %v1593
  %v1595 = vpop.xlane.xlu0 %1594
  %v1596 = vsel %vm479, %v1555, 0.0
  %1597 = vadd.xlane.f32.xlu0 %v1596
  %v1598 = vpop.xlane.xlu0 %1597
  %v1599 = vsel %vm479, %v1558, 0.0
  %1600 = vadd.xlane.f32.xlu0 %v1599
  %v1601 = vpop.xlane.xlu0 %1600
  %v1602 = vsel %vm479, %v1563, 0.0
  %1603 = vadd.xlane.f32.xlu0 %v1602
  %v1604 = vpop.xlane.xlu0 %1603
  %v1605 = vsel %vm479, %v1566, 0.0
  %1606 = vadd.xlane.f32.xlu0 %v1605
  %v1607 = vpop.xlane.xlu0 %1606
  %v1608 = vsel %vm486, %v1571, 0.0
  %1609 = vadd.xlane.f32.xlu0 %v1608
  %v1610 = vpop.xlane.xlu0 %1609
  %v1611 = vmul.f32 %v1547, %v1547
  %v1612 = vmul.f32 %v1550, %v1550
  %v1613 = vmul.f32 %v1555, %v1555
  %v1614 = vmul.f32 %v1558, %v1558
  %v1615 = vmul.f32 %v1563, %v1563
  %v1616 = vmul.f32 %v1566, %v1566
  %v1617 = vmul.f32 %v1571, %v1571
  %v1618 = vsel %vm479, %v1611, 0.0
  %1619 = vadd.xlane.f32.xlu0 %v1618
  %v1620 = vpop.xlane.xlu0 %1619
  %v1621 = vsel %vm479, %v1612, 0.0
  %1622 = vadd.xlane.f32.xlu0 %v1621
  %v1623 = vpop.xlane.xlu0 %1622
  %v1624 = vsel %vm479, %v1613, 0.0
  %1625 = vadd.xlane.f32.xlu0 %v1624
  %v1626 = vpop.xlane.xlu0 %1625
  %v1627 = vsel %vm479, %v1614, 0.0
  %1628 = vadd.xlane.f32.xlu0 %v1627
  %v1629 = vpop.xlane.xlu0 %1628
  %v1630 = vsel %vm479, %v1615, 0.0
  %1631 = vadd.xlane.f32.xlu0 %v1630
  %v1632 = vpop.xlane.xlu0 %1631
  %v1633 = vsel %vm479, %v1616, 0.0
  %1634 = vadd.xlane.f32.xlu0 %v1633
  %v1635 = vpop.xlane.xlu0 %1634
  %v1636 = vsel %vm486, %v1617, 0.0
  %1637 = vadd.xlane.f32.xlu0 %v1636
  %v1638 = vpop.xlane.xlu0 %1637
  %v1639 = vmul.f32 %v1592, 0.025
  %v1640 = vmul.f32 %v1595, 0.025
  %v1641 = vmul.f32 %v1598, 0.025
  %v1642 = vmul.f32 %v1601, 0.025
  %v1643 = vmul.f32 %v1604, 0.025
  %v1644 = vmul.f32 %v1607, 0.025
  %v1645 = vmul.f32 %v1610, 0.025
  %v1646 = vmul.f32 %v1620, 0.025
  %v1647 = vmul.f32 %v1623, 0.025
  %v1648 = vmul.f32 %v1626, 0.025
  %v1649 = vmul.f32 %v1629, 0.025
  %v1650 = vmul.f32 %v1632, 0.025
  %v1651 = vmul.f32 %v1635, 0.025
  %v1652 = vmul.f32 %v1638, 0.025
  %v1653 = vmul.f32 %v1639, %v1639
  %v1654 = vmul.f32 %v1640, %v1640
  %v1655 = vmul.f32 %v1641, %v1641
  %v1656 = vmul.f32 %v1642, %v1642
  %v1657 = vmul.f32 %v1643, %v1643
  %v1658 = vmul.f32 %v1644, %v1644
  %v1659 = vmul.f32 %v1645, %v1645
  %v1660 = vsub.f32 %v1646, %v1653
  %v1661 = vsub.f32 %v1647, %v1654
  %v1662 = vsub.f32 %v1648, %v1655
  %v1663 = vsub.f32 %v1649, %v1656
  %v1664 = vsub.f32 %v1650, %v1657
  %v1665 = vsub.f32 %v1651, %v1658
  %v1666 = vsub.f32 %v1652, %v1659
  %v1667 = vmax.f32 %v1660, 0.0
  %v1668 = vmax.f32 %v1661, 0.0
  %v1669 = vmax.f32 %v1662, 0.0
  %v1670 = vmax.f32 %v1663, 0.0
  %v1671 = vmax.f32 %v1664, 0.0
  %v1672 = vmax.f32 %v1665, 0.0
  %v1673 = vmax.f32 %v1666, 0.0
  %v1674 = vadd.f32 %v1667, 1e-06
  %v1675 = vadd.f32 %v1668, 1e-06
  %v1676 = vadd.f32 %v1669, 1e-06
  %v1677 = vadd.f32 %v1670, 1e-06
  %v1678 = vadd.f32 %v1671, 1e-06
  %v1679 = vadd.f32 %v1672, 1e-06
  %v1680 = vadd.f32 %v1673, 1e-06
  %v1681 = vrsqrt.pop %v1674
  %v1682 = vrsqrt.pop %v1675
  %v1683 = vrsqrt.pop %v1676
  %v1684 = vrsqrt.pop %v1677
  %v1685 = vrsqrt.pop %v1678
  %v1686 = vrsqrt.pop %v1679
  %v1687 = vrsqrt.pop %v1680
  %v1688 = vmul.f32 %v1576, %v1681
  %v1689 = vmul.f32 %v1577, %v1682
  %v1690 = vmul.f32 %v1578, %v1683
  %v1691 = vmul.f32 %v1579, %v1684
  %v1692 = vmul.f32 %v1580, %v1685
  %v1693 = vmul.f32 %v1581, %v1686
  %v1694 = vmul.f32 %v1582, %v1687
  %v1695 = vmul.f32 %v1639, %v1688
  %v1696 = vmul.f32 %v1640, %v1689
  %v1697 = vmul.f32 %v1641, %v1690
  %v1698 = vmul.f32 %v1642, %v1691
  %v1699 = vmul.f32 %v1643, %v1692
  %v1700 = vmul.f32 %v1644, %v1693
  %v1701 = vmul.f32 %v1645, %v1694
  %v1702 = vsub.f32 %v1583, %v1695
  %v1703 = vsub.f32 %v1584, %v1696
  %v1704 = vsub.f32 %v1585, %v1697
  %v1705 = vsub.f32 %v1586, %v1698
  %v1706 = vsub.f32 %v1587, %v1699
  %v1707 = vsub.f32 %v1588, %v1700
  %v1708 = vsub.f32 %v1589, %v1701
  %1710 = vset.pattern.permute.xlu0 0
  %1711 = vperm.xlu0 %1710, %v1688
  %v1712 = vpop.permute.xlu0 %1711
  %1715 = vset.pattern.permute.xlu0 0
  %1716 = vperm.xlu0 %1715, %v1689
  %v1717 = vpop.permute.xlu0 %1716
  %1720 = vset.pattern.permute.xlu0 0
  %1721 = vperm.xlu0 %1720, %v1690
  %v1722 = vpop.permute.xlu0 %1721
  %1725 = vset.pattern.permute.xlu0 0
  %1726 = vperm.xlu0 %1725, %v1691
  %v1727 = vpop.permute.xlu0 %1726
  %1730 = vset.pattern.permute.xlu0 0
  %1731 = vperm.xlu0 %1730, %v1692
  %v1732 = vpop.permute.xlu0 %1731
  %1735 = vset.pattern.permute.xlu0 0
  %1736 = vperm.xlu0 %1735, %v1693
  %v1737 = vpop.permute.xlu0 %1736
  %1740 = vset.pattern.permute.xlu0 0
  %1741 = vperm.xlu0 %1740, %v1694
  %v1742 = vpop.permute.xlu0 %1741
  %v1744 = vmul.f32 %v1547, %v1712
  %v1745 = vmul.f32 %v1550, %v1717
  %v1746 = vmul.f32 %v1555, %v1722
  %v1747 = vmul.f32 %v1558, %v1727
  %v1748 = vmul.f32 %v1563, %v1732
  %v1749 = vmul.f32 %v1566, %v1737
  %v1750 = vmul.f32 %v1571, %v1742
  %1752 = vset.pattern.permute.xlu0 0
  %1753 = vperm.xlu0 %1752, %v1702
  %v1754 = vpop.permute.xlu0 %1753
  %1757 = vset.pattern.permute.xlu0 0
  %1758 = vperm.xlu0 %1757, %v1703
  %v1759 = vpop.permute.xlu0 %1758
  %1762 = vset.pattern.permute.xlu0 0
  %1763 = vperm.xlu0 %1762, %v1704
  %v1764 = vpop.permute.xlu0 %1763
  %1767 = vset.pattern.permute.xlu0 0
  %1768 = vperm.xlu0 %1767, %v1705
  %v1769 = vpop.permute.xlu0 %1768
  %1772 = vset.pattern.permute.xlu0 0
  %1773 = vperm.xlu0 %1772, %v1706
  %v1774 = vpop.permute.xlu0 %1773
  %1777 = vset.pattern.permute.xlu0 0
  %1778 = vperm.xlu0 %1777, %v1707
  %v1779 = vpop.permute.xlu0 %1778
  %1782 = vset.pattern.permute.xlu0 0
  %1783 = vperm.xlu0 %1782, %v1708
  %v1784 = vpop.permute.xlu0 %1783
  %v1786 = vadd.f32 %v1744, %v1754
  %v1787 = vadd.f32 %v1745, %v1759
  %v1788 = vadd.f32 %v1746, %v1764
  %v1789 = vadd.f32 %v1747, %v1769
  %v1790 = vadd.f32 %v1748, %v1774
  %v1791 = vadd.f32 %v1749, %v1779
  %v1792 = vadd.f32 %v1750, %v1784
  %v1793 = vmax.f32 %v1786, 0.0
  %v1794 = vmax.f32 %v1787, 0.0
  %v1795 = vmax.f32 %v1788, 0.0
  %v1796 = vmax.f32 %v1789, 0.0
  %v1797 = vmax.f32 %v1790, 0.0
  %v1798 = vmax.f32 %v1791, 0.0
  %v1799 = vmax.f32 %v1792, 0.0
  %v1800 = vpack.c.bf16 %v1794, %v1793
  %v1801 = vpack.c.bf16 %v1796, %v1795
  %v1802 = vpack.c.bf16 %v1798, %v1797
  %v1803 = vpack.c.bf16 %v1799, %v1799
  %v1804 = vld [vmem:[%s16] sm:$0xf]
  %v1805 = vld [vmem:[%s16 + $0x4] sm:$0xf]
  %v1806 = vld [vmem:[%s16 + $0x8] sm:$0x3]
  %v1810 = vunpack.c.l.b16 %v1804
  %v1811 = vunpack.c.l.b16 %v1805
  %v1812 = vunpack.c.l.b16 %v1806
  %v1813 = vpack.c.b16 %v1811, %v1810
  %v1814 = vpack.c.b16 %v1812, %v1812
  %v1816 = vsel %vm976, %v1813, 0
  %v1819 = vsel %vm976, %v1814, 0
  %v1822 = vsel %vm995, %v1803, 0
  %1824 = vmatprep.subr.bf16.mxu0 0
  %1825 = vmatpush1.bf16.msra.mxu0 0
  %1826 = vmatprep.subr.bf16.mxu0 0
  %1827 = vmatpush1.bf16.msra.mxu0 0
  %1828 = vmatprep.subr.bf16.mxu0 0
  %1829 = vmatpush1.bf16.msra.mxu0 0
  %1830 = vmatprep.subr.bf16.mxu0 0
  %1831 = vmatpush1.bf16.msra.mxu0 0
  %1832 = vmatprep.subr.bf16.mxu0 0
  %1833 = vmatpush1.bf16.msra.mxu0 %v1822
  %1834 = vmatprep.subr.bf16.mxu0 0
  %1835 = vmatpush1.bf16.msra.mxu0 %v1802
  %1836 = vmatprep.subr.bf16.mxu0 0
  %1837 = vmatpush1.bf16.msra.mxu0 %v1801
  %1838 = vmatprep.subr.bf16.mxu0 0
  %1839 = vmatpush1.bf16.msra.mxu0 %v1800
  %1840 = vmatprep.subr.bf16.mxu0 0
  %1841 = vmatpush2.bf16.msra.mxu0 0
  %1842 = vmatprep.subr.bf16.mxu0 0
  %1843 = vmatpush2.bf16.msra.mxu0 0
  %1844 = vmatprep.subr.bf16.mxu0 0
  %1845 = vmatpush2.bf16.msra.mxu0 0
  %1846 = vmatprep.subr.bf16.mxu0 0
  %1847 = vmatpush2.bf16.msra.mxu0 0
  %1848 = vmatprep.subr.bf16.mxu0 0
  %1849 = vmatpush2.bf16.msra.mxu0 0
  %1850 = vmatprep.subr.bf16.mxu0 0
  %1851 = vmatpush2.bf16.msra.mxu0 0
  %1852 = vmatprep.subr.bf16.mxu0 0
  %1853 = vmatpush2.bf16.msra.mxu0 0
  %1854 = vmatprep.subr.bf16.mxu0 0
  %1855 = vmatpush2.bf16.msra.mxu0 0
  %1856 = vmatprep.mubr.bf16.mxu0 0
  %1857 = vmatmul.mubr.bf16.gmra.mxu0 %v1816
  %v1858 = vpop.f32.mrf.mxu0
  %v1859 = vadd.f32 0.0, %v1858
  %v1860 = vpop.f32.mrf.mxu0
  %v1861 = vpop.f32.mrf.mxu0
  %v1862 = vadd.f32 0.0, %v1861
  %v1863 = vpop.f32.mrf.mxu0
  %1864 = vmatprep.mubr.bf16.mxu0 0
  %1865 = vmatmul.mubr.bf16.gmra.mxu0 %v1819
  %v1866 = vpop.f32.mrf.mxu0
  %v1867 = vadd.f32 0.0, %v1866
  %v1868 = vpop.f32.mrf.mxu0
  %v1869 = vpop.f32.mrf.mxu0
  %v1870 = vpop.f32.mrf.mxu0
  %1871 = vdwg.mxu0
  %v1872 = vld [vmem:[%s17] sm:$0xff]
  %v1873 = vld [vmem:[%s17 + $0x8] sm:$0xff]
  %v1874 = vld [vmem:[%s17 + $0x10] sm:$0xf]
  %v1875 = vld [vmem:[%s18] sm:$0xff]
  %v1876 = vld [vmem:[%s18 + $0x8] sm:$0xff]
  %v1877 = vld [vmem:[%s18 + $0x10] sm:$0xf]
  %v1878 = vsel %vm479, %v1859, 0.0
  %1879 = vadd.xlane.f32.xlu0 %v1878
  %v1880 = vpop.xlane.xlu0 %1879
  %v1881 = vsel %vm479, %v1862, 0.0
  %1882 = vadd.xlane.f32.xlu0 %v1881
  %v1883 = vpop.xlane.xlu0 %1882
  %vm1884 = vcmask 322560
  %v1885 = vsel %vm1884, %v1867, 0.0
  %1886 = vadd.xlane.f32.xlu0 %v1885
  %v1887 = vpop.xlane.xlu0 %1886
  %v1888 = vmul.f32 %v1859, %v1859
  %v1889 = vmul.f32 %v1862, %v1862
  %v1890 = vmul.f32 %v1867, %v1867
  %v1891 = vsel %vm479, %v1888, 0.0
  %1892 = vadd.xlane.f32.xlu0 %v1891
  %v1893 = vpop.xlane.xlu0 %1892
  %v1894 = vsel %vm479, %v1889, 0.0
  %1895 = vadd.xlane.f32.xlu0 %v1894
  %v1896 = vpop.xlane.xlu0 %1895
  %v1897 = vsel %vm1884, %v1890, 0.0
  %1898 = vadd.xlane.f32.xlu0 %v1897
  %v1899 = vpop.xlane.xlu0 %1898
  %v1900 = vmul.f32 %v1880, 0.025
  %v1901 = vmul.f32 %v1883, 0.025
  %v1902 = vmul.f32 %v1887, 0.025
  %v1903 = vmul.f32 %v1893, 0.025
  %v1904 = vmul.f32 %v1896, 0.025
  %v1905 = vmul.f32 %v1899, 0.025
  %v1906 = vmul.f32 %v1900, %v1900
  %v1907 = vmul.f32 %v1901, %v1901
  %v1908 = vmul.f32 %v1902, %v1902
  %v1909 = vsub.f32 %v1903, %v1906
  %v1910 = vsub.f32 %v1904, %v1907
  %v1911 = vsub.f32 %v1905, %v1908
  %v1912 = vmax.f32 %v1909, 0.0
  %v1913 = vmax.f32 %v1910, 0.0
  %v1914 = vmax.f32 %v1911, 0.0
  %v1915 = vadd.f32 %v1912, 1e-06
  %v1916 = vadd.f32 %v1913, 1e-06
  %v1917 = vadd.f32 %v1914, 1e-06
  %v1918 = vrsqrt.pop %v1915
  %v1919 = vrsqrt.pop %v1916
  %v1920 = vrsqrt.pop %v1917
  %v1921 = vmul.f32 %v1872, %v1918
  %v1922 = vmul.f32 %v1873, %v1919
  %v1923 = vmul.f32 %v1874, %v1920
  %v1924 = vmul.f32 %v1900, %v1921
  %v1925 = vmul.f32 %v1901, %v1922
  %v1926 = vmul.f32 %v1902, %v1923
  %v1927 = vsub.f32 %v1875, %v1924
  %v1928 = vsub.f32 %v1876, %v1925
  %v1929 = vsub.f32 %v1877, %v1926
  %1931 = vset.pattern.permute.xlu0 0
  %1932 = vperm.xlu0 %1931, %v1921
  %v1933 = vpop.permute.xlu0 %1932
  %1936 = vset.pattern.permute.xlu0 0
  %1937 = vperm.xlu0 %1936, %v1922
  %v1938 = vpop.permute.xlu0 %1937
  %1941 = vset.pattern.permute.xlu0 0
  %1942 = vperm.xlu0 %1941, %v1923
  %v1943 = vpop.permute.xlu0 %1942
  %v1945 = vmul.f32 %v1859, %v1933
  %v1946 = vmul.f32 %v1862, %v1938
  %v1947 = vmul.f32 %v1867, %v1943
  %1949 = vset.pattern.permute.xlu0 0
  %1950 = vperm.xlu0 %1949, %v1927
  %v1951 = vpop.permute.xlu0 %1950
  %1954 = vset.pattern.permute.xlu0 0
  %1955 = vperm.xlu0 %1954, %v1928
  %v1956 = vpop.permute.xlu0 %1955
  %1959 = vset.pattern.permute.xlu0 0
  %1960 = vperm.xlu0 %1959, %v1929
  %v1961 = vpop.permute.xlu0 %1960
  %v1963 = vadd.f32 %v1945, %v1951
  %v1964 = vadd.f32 %v1946, %v1956
  %v1965 = vadd.f32 %v1947, %v1961
  %1966 = vst.msk [vmem:[%s19] sm:$0xff] %vm479, %v1963
  %1967 = vst.msk [vmem:[%s19 + $0x8] sm:$0xff] %vm479, %v1964
  %1968 = vst.msk [vmem:[%s19 + $0x10] sm:$0xf] %vm1884, %v1965
  // Predicated region
  $region78: #{fnnetr_forward.1} parent=0 // pred_check
    _
  $region79: #{fnnetr_forward.1} parent=0 // pred_check_branch
    %1970 = sbr.rel (0) target = $region81
  $region80: #{fnnetr_forward.1} parent=0 // pred_region
    _
  $region81: #{fnnetr_forward.1} parent=0 // pred_fallthru
    _
  // Predicated region
  $region82: #{fnnetr_forward.1} parent=0 // pred_check
    _
  $region83: #{fnnetr_forward.1} parent=0 // pred_check_branch
    %1972 = sbr.rel (0) target = $region85
  $region84: #{fnnetr_forward.1} parent=0 // pred_region
    _
  $region85: #{fnnetr_forward.1} parent=0 // pred_fallthru
    _

</llo_original>
